<compile_context>
chip_gen: v7x
topology: tpu7x:2x2x1
jax: 0.10.0
libtpu: 0.0.40
codegen_flags: <defaults>
</compile_context>

<pallas_src>
import functools

import jax
import jax.numpy as jnp
from jax import lax
from jax.experimental import pallas as pl
from jax.experimental.pallas import tpu as pltpu


def _round_up(x, m):
    return ((x + m - 1) // m) * m


def _pad_to(x, target_shape):
    pads = [(0, t - s) for s, t in zip(x.shape, target_shape)]
    if all(p == (0, 0) for p in pads):
        return x
    return jnp.pad(x, pads)


def _attention_kernel(h_ref, ctx_ref, w_ref, attn_ref, out_ref, *, s_valid):
    h = h_ref[...]                 # (bB, Dp)  f32
    ctx = ctx_ref[...]             # (bB, Sp, Dp)  f32

    # scores[b, s] = sum_d h[b, d] * ctx[b, s, d]  -- batched MXU matmul
    # (same 'bqd,bkd->bqk' pattern as flash attention, with q == 1).
    scores = jnp.einsum('bqd,bsd->bqs', h[:, None, :], ctx,
                        preferred_element_type=jnp.float32)   # (bB, 1, Sp)

    # Mask padded sequence positions (static: s_valid known at trace time).
    if s_valid < scores.shape[-1]:
        col = lax.broadcasted_iota(jnp.int32, scores.shape, 2)
        scores = jnp.where(col < s_valid, scores, jnp.float32(-1e30))

    # Softmax over the sequence (lane) axis; reciprocal on the EUP.
    m = jnp.max(scores, axis=-1, keepdims=True)               # (bB, 1, 1)
    e = jnp.exp(scores - m)
    denom = jnp.sum(e, axis=-1, keepdims=True)
    attn = e * pl.reciprocal(denom, approx=True)               # (bB, 1, Sp)
    attn_ref[...] = attn[:, 0, :].astype(attn_ref.dtype)       # (bB, Sp)

    # weighted[b, d] = sum_s attn[b, s] * ctx[b, s, d]  -- batched MXU matmul
    weighted = jnp.einsum('bqs,bsd->bqd', attn, ctx,
                          preferred_element_type=jnp.float32)[:, 0, :]  # (bB, Dp)

    # Fused projection: concat([h, weighted]) @ W.T with W contracted on its
    # last axis (no wrapper transpose), then tanh.
    cat = jnp.concatenate([h, weighted], axis=-1)              # (bB, 2*Dp)
    out = lax.dot_general(cat, w_ref[...],
                          dimension_numbers=(((1,), (1,)), ((), ())),
                          preferred_element_type=jnp.float32)  # (bB, Dp)
    out_ref[...] = jnp.tanh(out).astype(out_ref.dtype)


def attention_forward(h, context, weight, *, block_b=8):
    """JAX/Pallas equivalent of Attention.forward.

    h:       (B, D) float32
    context: (B, S, D) float32 or None
    weight:  (D, 2D) float32  -- nn.Linear(dim*2, dim, bias=False).weight

    Returns (attn, out) just like the PyTorch module.
    """
    if context is None:
        return None, h

    B, D = h.shape
    Bc, S, Dc = context.shape
    assert B == Bc and D == Dc
    assert weight.shape == (D, 2 * D)

    # Pad to TPU-friendly shapes: batch -> multiple of block_b (full sublanes),
    # seq / feature -> multiples of 128 (lane-dense, MXU-aligned).
    Bp = _round_up(max(B, block_b), block_b)
    Sp = _round_up(S, 128)
    Dp = _round_up(D, 128)

    h_p = _pad_to(h.astype(jnp.float32), (Bp, Dp))
    ctx_p = _pad_to(context.astype(jnp.float32), (Bp, Sp, Dp))

    w = weight.astype(jnp.float32)
    if Dp == D:
        w_p = w                                                   # (D, 2D) as-is
    else:
        # Pad each (D, D) half separately so the lane-concat layout of
        # cat([h, weighted]) inside the kernel lines up with the columns.
        w_p = jnp.concatenate(
            [_pad_to(w[:, :D], (Dp, Dp)), _pad_to(w[:, D:], (Dp, Dp))], axis=1)

    n_blocks = Bp // block_b

    # Per-grid-step VMEM footprint (f32), used to set an explicit, v7x-safe limit.
    block_bytes = 4 * (block_b * Dp          # h tile
                       + block_b * Sp * Dp   # context tile
                       + Dp * 2 * Dp         # weight (replicated)
                       + block_b * Sp        # attn tile
                       + block_b * Dp)       # out tile
    vmem_limit = int(min(64 * 1024 * 1024, max(16 * 1024 * 1024, 4 * block_bytes)))

    kernel = functools.partial(_attention_kernel, s_valid=S)

    attn_p, out_p = pl.pallas_call(
        kernel,
        grid=(n_blocks,),
        out_shape=(
            jax.ShapeDtypeStruct((Bp, Sp), jnp.float32),
            jax.ShapeDtypeStruct((Bp, Dp), jnp.float32),
        ),
        in_specs=[
            pl.BlockSpec((block_b, Dp), lambda b: (b, 0)),
            pl.BlockSpec((block_b, Sp, Dp), lambda b: (b, 0, 0)),
            pl.BlockSpec((Dp, 2 * Dp), lambda b: (0, 0)),   # replicated weight
        ],
        out_specs=(
            pl.BlockSpec((block_b, Sp), lambda b: (b, 0)),
            pl.BlockSpec((block_b, Dp), lambda b: (b, 0)),
        ),
        compiler_params=pltpu.CompilerParams(
            dimension_semantics=("parallel",),
            vmem_limit_bytes=vmem_limit,
        ),
    )(h_p, ctx_p, w_p)

    return attn_p[:B, :S], out_p[:B, :D]


def _reference(h, context, weight):
    scores = jnp.einsum('bsd,bd->bs', context, h)
    attn = jax.nn.softmax(scores, axis=1)
    weighted = jnp.einsum('bs,bsd->bd', attn, context)
    cat = jnp.concatenate([h, weighted], axis=1)
    return attn, jnp.tanh(cat @ weight.T)


if __name__ == "__main__":
    B, S, D = 2, 8, 32
    key = jax.random.PRNGKey(0)
    k_h, k_c, k_w = jax.random.split(key, 3)

    h = jax.random.normal(k_h, (B, D), dtype=jnp.float32)
    context = jax.random.normal(k_c, (B, S, D), dtype=jnp.float32)
    # Deterministic init of nn.Linear(dim*2, dim, bias=False).weight -> (D, 2D)
    bound = 1.0 / jnp.sqrt(2.0 * D)
    weight = jax.random.uniform(k_w, (D, 2 * D), minval=-bound, maxval=bound,
                                dtype=jnp.float32)

    attn, out = attention_forward(h, context, weight)
    jax.block_until_ready((attn, out))

    attn_ref, out_ref = _reference(h, context, weight)
    assert attn.shape == (B, S) and out.shape == (B, D)
    # Tolerances relaxed vs. exact softmax because of pl.reciprocal(approx=True).
    assert jnp.allclose(attn, attn_ref, atol=2e-3, rtol=2e-3)
    assert jnp.allclose(out, out_ref, atol=2e-3, rtol=2e-3)
    assert jnp.allclose(jnp.sum(attn, axis=1), 1.0, atol=5e-3)

    # None-context early-return path of the module.
    a_none, o_none = attention_forward(h, None, weight)
    assert a_none is None and jnp.array_equal(o_none, h)

    print("KERNEL_OK")
</pallas_src>

<mosaic_0001>
module attributes {stable_mosaic.version = 11 : i64} {
  func.func @_attention_kernel(%arg0: i32, %arg1: memref<8x128xf32, #tpu.memory_space<vmem>>, %arg2: memref<8x128x128xf32, #tpu.memory_space<vmem>>, %arg3: memref<128x256xf32, #tpu.memory_space<vmem>>, %arg4: memref<8x128xf32, #tpu.memory_space<vmem>>, %arg5: memref<8x128xf32, #tpu.memory_space<vmem>>) attributes {dimension_semantics = [#tpu.dimension_semantics<parallel>], iteration_bounds = array<i64: 1>, scalar_prefetch = 0 : i64, scratch_operands = 0 : i64, tpu.core_type = #tpu.core_type<tc>, window_params = [{transform_indices = @transform_0, window_bounds = array<i64: 8, 128>}, {transform_indices = @transform_1, window_bounds = array<i64: 8, 128, 128>}, {pipeline_mode = #tpu.pipeline_mode<synchronous>, transform_indices = @transform_2, window_bounds = array<i64: 128, 256>}, {transform_indices = @transform_3, window_bounds = array<i64: 8, 128>}, {transform_indices = @transform_4, window_bounds = array<i64: 8, 128>}]} {
    %c0 = arith.constant 0 : index
    %c0_0 = arith.constant 0 : index
    %0 = vector.load %arg1[%c0, %c0_0] : memref<8x128xf32, #tpu.memory_space<vmem>>, vector<8x128xf32>
    %c0_1 = arith.constant 0 : index
    %c0_2 = arith.constant 0 : index
    %c0_3 = arith.constant 0 : index
    %1 = vector.load %arg2[%c0_1, %c0_2, %c0_3] : memref<8x128x128xf32, #tpu.memory_space<vmem>>, vector<8x128x128xf32>
    %2 = vector.shape_cast %0 : vector<8x128xf32> to vector<8x1x128xf32>
    "tpu.trace_start"() <{level = 10 : i32, message = "bqd,bsd->bqs"}> : () -> ()
    %cst = arith.constant dense<0.000000e+00> : vector<8x1x128xf32>
    %3 = tpu.matmul %2, %1, %cst {dimension_numbers = #tpu.dot_dimension_numbers<[2], [2], [1], [1], [0, 0, 0, 1, 1, 1], [0], [0]>} : vector<8x1x128xf32>, vector<8x128x128xf32>, vector<8x1x128xf32> -> vector<8x1x128xf32>
    "tpu.trace_stop"() : () -> ()
    %4 = tpu.iota {dimensions = array<i32: 2>} : vector<8x1x128xi32>
    %c8_i32 = arith.constant 8 : i32
    %5 = vector.broadcast %c8_i32 : i32 to vector<8x1x128xi32>
    %6 = arith.cmpi slt, %4, %5 : vector<8x1x128xi32>
    %cst_4 = arith.constant -1.000000e+30 : f32
    %7 = vector.broadcast %cst_4 : f32 to vector<8x1x128xf32>
    %8 = arith.select %6, %3, %7 : vector<8x1x128xi1>, vector<8x1x128xf32>
    %cst_5 = arith.constant dense<0xFF800000> : vector<8x1xf32>
    %9 = vector.multi_reduction <maximumf>, %8, %cst_5 [2] : vector<8x1x128xf32> to vector<8x1xf32>
    %10 = vector.shape_cast %9 : vector<8x1xf32> to vector<8x1x1xf32>
    %11 = vector.broadcast %10 : vector<8x1x1xf32> to vector<8x1x128xf32>
    %12 = arith.subf %8, %11 : vector<8x1x128xf32>
    %13 = math.exp %12 : vector<8x1x128xf32>
    %cst_6 = arith.constant dense<0.000000e+00> : vector<8x1xf32>
    %14 = vector.multi_reduction <add>, %13, %cst_6 [2] : vector<8x1x128xf32> to vector<8x1xf32>
    %15 = vector.shape_cast %14 : vector<8x1xf32> to vector<8x1x1xf32>
    %16 = tpu.reciprocal %15 {approx = true} : vector<8x1x1xf32> -> vector<8x1x1xf32>
    %17 = vector.broadcast %16 : vector<8x1x1xf32> to vector<8x1x128xf32>
    %18 = arith.mulf %13, %17 : vector<8x1x128xf32>
    %19 = vector.shape_cast %18 : vector<8x1x128xf32> to vector<8x128xf32>
    %c0_7 = arith.constant 0 : index
    %c0_8 = arith.constant 0 : index
    %20 = vector.load %arg4[%c0_7, %c0_8] : memref<8x128xf32, #tpu.memory_space<vmem>>, vector<8x128xf32>
    tpu.vector_store %arg4[%c0_7, %c0_8], %19 {strides = array<i32>} : memref<8x128xf32, #tpu.memory_space<vmem>>, vector<8x128xf32>,
    "tpu.trace_start"() <{level = 10 : i32, message = "bqs,bsd->bqd"}> : () -> ()
    %cst_9 = arith.constant dense<0.000000e+00> : vector<8x1x128xf32>
    %21 = tpu.matmul %18, %1, %cst_9 {dimension_numbers = #tpu.dot_dimension_numbers<[2], [1], [1], [2], [0, 0, 0, 1, 1, 2], [0], [0]>} : vector<8x1x128xf32>, vector<8x128x128xf32>, vector<8x1x128xf32> -> vector<8x1x128xf32>
    "tpu.trace_stop"() : () -> ()
    %22 = vector.shape_cast %21 : vector<8x1x128xf32> to vector<8x128xf32>
    %23 = tpu.concatenate %0, %22 in 1 : vector<8x128xf32>, vector<8x128xf32> -> vector<8x256xf32>
    %c0_10 = arith.constant 0 : index
    %c0_11 = arith.constant 0 : index
    %24 = vector.load %arg3[%c0_10, %c0_11] : memref<128x256xf32, #tpu.memory_space<vmem>>, vector<128x256xf32>
    %cst_12 = arith.constant dense<0.000000e+00> : vector<8x128xf32>
    %25 = tpu.matmul %23, %24, %cst_12 {dimension_numbers = #tpu.dot_dimension_numbers<[1], [1], [0], [0], [0, 0, 1, 0], [], []>} : vector<8x256xf32>, vector<128x256xf32>, vector<8x128xf32> -> vector<8x128xf32>
    %26 = math.tanh %25 : vector<8x128xf32>
    %c0_13 = arith.constant 0 : index
    %c0_14 = arith.constant 0 : index
    %27 = vector.load %arg5[%c0_13, %c0_14] : memref<8x128xf32, #tpu.memory_space<vmem>>, vector<8x128xf32>
    tpu.vector_store %arg5[%c0_13, %c0_14], %26 {strides = array<i32>} : memref<8x128xf32, #tpu.memory_space<vmem>>, vector<8x128xf32>,
    return
  }
  func.func @transform_0(%arg0: i32) -> (i32, i32) {
    %c0_i32 = arith.constant 0 : i32
    %c0_i32_0 = arith.constant 0 : i32
    return %arg0, %c0_i32 : i32, i32
  }
  func.func @transform_1(%arg0: i32) -> (i32, i32, i32) {
    %c0_i32 = arith.constant 0 : i32
    %c0_i32_0 = arith.constant 0 : i32
    %c0_i32_1 = arith.constant 0 : i32
    return %arg0, %c0_i32, %c0_i32_0 : i32, i32, i32
  }
  func.func @transform_2(%arg0: i32) -> (i32, i32) {
    %c0_i32 = arith.constant 0 : i32
    %c0_i32_0 = arith.constant 0 : i32
    %c0_i32_1 = arith.constant 0 : i32
    return %c0_i32, %c0_i32_0 : i32, i32
  }
  func.func @transform_3(%arg0: i32) -> (i32, i32) {
    %c0_i32 = arith.constant 0 : i32
    %c0_i32_0 = arith.constant 0 : i32
    return %arg0, %c0_i32 : i32, i32
  }
  func.func @transform_4(%arg0: i32) -> (i32, i32) {
    %c0_i32 = arith.constant 0 : i32
    %c0_i32_0 = arith.constant 0 : i32
    return %arg0, %c0_i32 : i32, i32
  }
}

</mosaic_0001>

<llo_original>
// kernel: tpu_custom_call.1
$region0: #{tpu_custom_call.1}
  #allocation0 [shape = 'u32[]', space=smem, size = 0x4, offset = 0x4, fixed_abs, tag = 'smem constant byte address 0x4 - core index']
  #allocation1 [shape = 'u32[144,128]{1,0:T(1,128)}', space=vmem, size = 0x12000, scoped, tag = 'internal scratch']
  %s0 = inlined_call_operand.hbm [shape: f32[8,128], index: 0, kind: input, shape index: {}]
  %s1 = inlined_call_operand.hbm [shape: f32[8,128,128], index: 1, kind: input, shape index: {}]
  %s2 = inlined_call_operand.hbm [shape: f32[128,256], index: 2, kind: input, shape index: {}]
  %s3 = inlined_call_operand.hbm [shape: f32[8,128], index: 3, kind: output, shape index: {0}]
  %s4 = inlined_call_operand.hbm [shape: f32[8,128], index: 4, kind: output, shape index: {1}]
  %5 = xla_tuple %s3, %s4
  %s6 = sld [smem:[#allocation0]]
  $region42: #{tpu_custom_call.1} parent=0
    _
  %s8 = ssub.s32 1, %s6
  %s9 = scalar_select 0, %s8, %s6
  $region1: #{tpu_custom_call.1} parent=0
    #allocation2 [shape = 'u8[4096]{0}', space=vmem, size = 0x1000, scoped, tag = 'input window, operand 0, single buffered']
    #allocation3 [shape = 's32[1]{0}', space=sflag, size = 0x4, scoped, tag = 'scoped memory for tpu_custom_call.1']
    #allocation4 [shape = 's32[1]{0}', space=sflag, size = 0x4, scoped, tag = 'scoped memory for tpu_custom_call.1']
    #allocation5 [shape = 'u8[524288]{0}', space=vmem, size = 0x80000, scoped, tag = 'input window, operand 1, single buffered']
    #allocation6 [shape = 's32[1]{0}', space=sflag, size = 0x4, scoped, tag = 'scoped memory for tpu_custom_call.1']
    #allocation7 [shape = 'u8[131072]{0}', space=vmem, size = 0x20000, scoped, tag = 'input window, operand 2, single buffered']
    #allocation8 [shape = 'u8[4096]{0}', space=vmem, size = 0x1000, scoped, tag = 'output window, operand 0, single buffered']
    #allocation9 [shape = 'u8[4096]{0}', space=vmem, size = 0x1000, scoped, tag = 'output window, operand 1, single buffered']
    #allocation10 [shape = 's32[1]{0}', space=sflag, size = 0x4, scoped, tag = 'scoped memory for tpu_custom_call.1']
    %10 = vsyncpa [#allocation3], 0
    %11 = vsyncpa [#allocation6], 0
    %12 = vsyncpa [#allocation4], 0
    %13 = vsyncpa [#allocation10], 0
    // Predicated region
    $region2: #{tpu_custom_call.1} parent=1 // pred_check
      _
    $region3: #{tpu_custom_call.1} parent=1 // pred_check_branch
      %15 = sbr.rel (0) target = $region5
    $region4: #{tpu_custom_call.1} parent=1 // pred_region
      %s17 = ssub.s32 128, 128
      %18 = vsyncadd [#allocation3], %s17
      %s20 = sshll.u32 [#allocation2], 4
      %s21 = int_to_ptr.vmem [resolvable:$true] %s20
      %23 = dma.hbm_to_vmem [thread:$0]  %s0, 128, %s21, [#allocation3]
    $region5: #{tpu_custom_call.1} parent=1 // pred_fallthru
      _
    // Predicated region
    $region6: #{tpu_custom_call.1} parent=1 // pred_check
      _
    $region7: #{tpu_custom_call.1} parent=1 // pred_check_branch
      %25 = sbr.rel (0) target = $region9
    $region8: #{tpu_custom_call.1} parent=1 // pred_region
      %s27 = ssub.s32 16384, 16384
      %28 = vsyncadd [#allocation6], %s27
      %s29 = sshll.u32 [#allocation5], 4
      %s30 = int_to_ptr.vmem [resolvable:$true] %s29
      %35 = dma.hbm_to_vmem [thread:$0]  %s1, 16384, %s30, [#allocation6], 128, 128, 8
    $region9: #{tpu_custom_call.1} parent=1 // pred_fallthru
      _
    // Predicated region
    $region10: #{tpu_custom_call.1} parent=1 // pred_check
      _
    $region11: #{tpu_custom_call.1} parent=1 // pred_check_branch
      %37 = sbr.rel (0) target = $region13
    $region12: #{tpu_custom_call.1} parent=1 // pred_region
      %s39 = ssub.s32 4096, 4096
      %40 = vsyncadd [#allocation6], %s39
      %s41 = sshll.u32 [#allocation7], 4
      %s42 = int_to_ptr.vmem [resolvable:$true] %s41
      %47 = dma.hbm_to_vmem [thread:$0]  %s2, 4096, %s42, [#allocation6], 256, 256, 16
    $region13: #{tpu_custom_call.1} parent=1 // pred_fallthru
      _
    // Predicated region
    $region14: #{tpu_custom_call.1} parent=1 // pred_check
      _
    $region15: #{tpu_custom_call.1} parent=1 // pred_check_branch
      %49 = sbr.rel (0) target = $region17
    $region16: #{tpu_custom_call.1} parent=1 // pred_region
      %50 = dma.done [#allocation3], 128
    $region17: #{tpu_custom_call.1} parent=1 // pred_fallthru
      _
    // Predicated region
    $region18: #{tpu_custom_call.1} parent=1 // pred_check
      _
    $region19: #{tpu_custom_call.1} parent=1 // pred_check_branch
      %52 = sbr.rel (0) target = $region21
    $region20: #{tpu_custom_call.1} parent=1 // pred_region
      %53 = dma.done [#allocation6], 16384
    $region21: #{tpu_custom_call.1} parent=1 // pred_fallthru
      _
    // Predicated region
    $region22: #{tpu_custom_call.1} parent=1 // pred_check
      _
    $region23: #{tpu_custom_call.1} parent=1 // pred_check_branch
      %55 = sbr.rel (0) target = $region25
    $region24: #{tpu_custom_call.1} parent=1 // pred_region
      %56 = dma.done [#allocation6], 4096
    $region25: #{tpu_custom_call.1} parent=1 // pred_fallthru
      _
    %v57 = vld [vmem:[#allocation2] sm:$0xff]
    %v58 = vld [vmem:[#allocation5] sm:$0xff]
    %v59 = vld [vmem:[#allocation5 + $0x8] sm:$0xff]
    %v60 = vld [vmem:[#allocation5 + $0x10] sm:$0xff]
    %v61 = vld [vmem:[#allocation5 + $0x18] sm:$0xff]
    %v62 = vld [vmem:[#allocation5 + $0x20] sm:$0xff]
    %v63 = vld [vmem:[#allocation5 + $0x28] sm:$0xff]
    %v64 = vld [vmem:[#allocation5 + $0x30] sm:$0xff]
    %v65 = vld [vmem:[#allocation5 + $0x38] sm:$0xff]
    %v66 = vld [vmem:[#allocation5 + $0x40] sm:$0xff]
    %v67 = vld [vmem:[#allocation5 + $0x48] sm:$0xff]
    %v68 = vld [vmem:[#allocation5 + $0x50] sm:$0xff]
    %v69 = vld [vmem:[#allocation5 + $0x58] sm:$0xff]
    %v70 = vld [vmem:[#allocation5 + $0x60] sm:$0xff]
    %v71 = vld [vmem:[#allocation5 + $0x68] sm:$0xff]
    %v72 = vld [vmem:[#allocation5 + $0x70] sm:$0xff]
    %v73 = vld [vmem:[#allocation5 + $0x78] sm:$0xff]
    %v74 = vld [vmem:[#allocation5 + $0x80] sm:$0xff]
    %v75 = vld [vmem:[#allocation5 + $0x88] sm:$0xff]
    %v76 = vld [vmem:[#allocation5 + $0x90] sm:$0xff]
    %v77 = vld [vmem:[#allocation5 + $0x98] sm:$0xff]
    %v78 = vld [vmem:[#allocation5 + $0xa0] sm:$0xff]
    %v79 = vld [vmem:[#allocation5 + $0xa8] sm:$0xff]
    %v80 = vld [vmem:[#allocation5 + $0xb0] sm:$0xff]
    %v81 = vld [vmem:[#allocation5 + $0xb8] sm:$0xff]
    %v82 = vld [vmem:[#allocation5 + $0xc0] sm:$0xff]
    %v83 = vld [vmem:[#allocation5 + $0xc8] sm:$0xff]
    %v84 = vld [vmem:[#allocation5 + $0xd0] sm:$0xff]
    %v85 = vld [vmem:[#allocation5 + $0xd8] sm:$0xff]
    %v86 = vld [vmem:[#allocation5 + $0xe0] sm:$0xff]
    %v87 = vld [vmem:[#allocation5 + $0xe8] sm:$0xff]
    %v88 = vld [vmem:[#allocation5 + $0xf0] sm:$0xff]
    %v89 = vld [vmem:[#allocation5 + $0xf8] sm:$0xff]
    %v90 = vld [vmem:[#allocation5 + $0x100] sm:$0xff]
    %v91 = vld [vmem:[#allocation5 + $0x108] sm:$0xff]
    %v92 = vld [vmem:[#allocation5 + $0x110] sm:$0xff]
    %v93 = vld [vmem:[#allocation5 + $0x118] sm:$0xff]
    %v94 = vld [vmem:[#allocation5 + $0x120] sm:$0xff]
    %v95 = vld [vmem:[#allocation5 + $0x128] sm:$0xff]
    %v96 = vld [vmem:[#allocation5 + $0x130] sm:$0xff]
    %v97 = vld [vmem:[#allocation5 + $0x138] sm:$0xff]
    %v98 = vld [vmem:[#allocation5 + $0x140] sm:$0xff]
    %v99 = vld [vmem:[#allocation5 + $0x148] sm:$0xff]
    %v100 = vld [vmem:[#allocation5 + $0x150] sm:$0xff]
    %v101 = vld [vmem:[#allocation5 + $0x158] sm:$0xff]
    %v102 = vld [vmem:[#allocation5 + $0x160] sm:$0xff]
    %v103 = vld [vmem:[#allocation5 + $0x168] sm:$0xff]
    %v104 = vld [vmem:[#allocation5 + $0x170] sm:$0xff]
    %v105 = vld [vmem:[#allocation5 + $0x178] sm:$0xff]
    %v106 = vld [vmem:[#allocation5 + $0x180] sm:$0xff]
    %v107 = vld [vmem:[#allocation5 + $0x188] sm:$0xff]
    %v108 = vld [vmem:[#allocation5 + $0x190] sm:$0xff]
    %v109 = vld [vmem:[#allocation5 + $0x198] sm:$0xff]
    %v110 = vld [vmem:[#allocation5 + $0x1a0] sm:$0xff]
    %v111 = vld [vmem:[#allocation5 + $0x1a8] sm:$0xff]
    %v112 = vld [vmem:[#allocation5 + $0x1b0] sm:$0xff]
    %v113 = vld [vmem:[#allocation5 + $0x1b8] sm:$0xff]
    %v114 = vld [vmem:[#allocation5 + $0x1c0] sm:$0xff]
    %v115 = vld [vmem:[#allocation5 + $0x1c8] sm:$0xff]
    %v116 = vld [vmem:[#allocation5 + $0x1d0] sm:$0xff]
    %v117 = vld [vmem:[#allocation5 + $0x1d8] sm:$0xff]
    %v118 = vld [vmem:[#allocation5 + $0x1e0] sm:$0xff]
    %v119 = vld [vmem:[#allocation5 + $0x1e8] sm:$0xff]
    %v120 = vld [vmem:[#allocation5 + $0x1f0] sm:$0xff]
    %v121 = vld [vmem:[#allocation5 + $0x1f8] sm:$0xff]
    %v122 = vld [vmem:[#allocation5 + $0x200] sm:$0xff]
    %v123 = vld [vmem:[#allocation5 + $0x208] sm:$0xff]
    %v124 = vld [vmem:[#allocation5 + $0x210] sm:$0xff]
    %v125 = vld [vmem:[#allocation5 + $0x218] sm:$0xff]
    %v126 = vld [vmem:[#allocation5 + $0x220] sm:$0xff]
    %v127 = vld [vmem:[#allocation5 + $0x228] sm:$0xff]
    %v128 = vld [vmem:[#allocation5 + $0x230] sm:$0xff]
    %v129 = vld [vmem:[#allocation5 + $0x238] sm:$0xff]
    %v130 = vld [vmem:[#allocation5 + $0x240] sm:$0xff]
    %v131 = vld [vmem:[#allocation5 + $0x248] sm:$0xff]
    %v132 = vld [vmem:[#allocation5 + $0x250] sm:$0xff]
    %v133 = vld [vmem:[#allocation5 + $0x258] sm:$0xff]
    %v134 = vld [vmem:[#allocation5 + $0x260] sm:$0xff]
    %v135 = vld [vmem:[#allocation5 + $0x268] sm:$0xff]
    %v136 = vld [vmem:[#allocation5 + $0x270] sm:$0xff]
    %v137 = vld [vmem:[#allocation5 + $0x278] sm:$0xff]
    %v138 = vld [vmem:[#allocation5 + $0x280] sm:$0xff]
    %v139 = vld [vmem:[#allocation5 + $0x288] sm:$0xff]
    %v140 = vld [vmem:[#allocation5 + $0x290] sm:$0xff]
    %v141 = vld [vmem:[#allocation5 + $0x298] sm:$0xff]
    %v142 = vld [vmem:[#allocation5 + $0x2a0] sm:$0xff]
    %v143 = vld [vmem:[#allocation5 + $0x2a8] sm:$0xff]
    %v144 = vld [vmem:[#allocation5 + $0x2b0] sm:$0xff]
    %v145 = vld [vmem:[#allocation5 + $0x2b8] sm:$0xff]
    %v146 = vld [vmem:[#allocation5 + $0x2c0] sm:$0xff]
    %v147 = vld [vmem:[#allocation5 + $0x2c8] sm:$0xff]
    %v148 = vld [vmem:[#allocation5 + $0x2d0] sm:$0xff]
    %v149 = vld [vmem:[#allocation5 + $0x2d8] sm:$0xff]
    %v150 = vld [vmem:[#allocation5 + $0x2e0] sm:$0xff]
    %v151 = vld [vmem:[#allocation5 + $0x2e8] sm:$0xff]
    %v152 = vld [vmem:[#allocation5 + $0x2f0] sm:$0xff]
    %v153 = vld [vmem:[#allocation5 + $0x2f8] sm:$0xff]
    %v154 = vld [vmem:[#allocation5 + $0x300] sm:$0xff]
    %v155 = vld [vmem:[#allocation5 + $0x308] sm:$0xff]
    %v156 = vld [vmem:[#allocation5 + $0x310] sm:$0xff]
    %v157 = vld [vmem:[#allocation5 + $0x318] sm:$0xff]
    %v158 = vld [vmem:[#allocation5 + $0x320] sm:$0xff]
    %v159 = vld [vmem:[#allocation5 + $0x328] sm:$0xff]
    %v160 = vld [vmem:[#allocation5 + $0x330] sm:$0xff]
    %v161 = vld [vmem:[#allocation5 + $0x338] sm:$0xff]
    %v162 = vld [vmem:[#allocation5 + $0x340] sm:$0xff]
    %v163 = vld [vmem:[#allocation5 + $0x348] sm:$0xff]
    %v164 = vld [vmem:[#allocation5 + $0x350] sm:$0xff]
    %v165 = vld [vmem:[#allocation5 + $0x358] sm:$0xff]
    %v166 = vld [vmem:[#allocation5 + $0x360] sm:$0xff]
    %v167 = vld [vmem:[#allocation5 + $0x368] sm:$0xff]
    %v168 = vld [vmem:[#allocation5 + $0x370] sm:$0xff]
    %v169 = vld [vmem:[#allocation5 + $0x378] sm:$0xff]
    %v170 = vld [vmem:[#allocation5 + $0x380] sm:$0xff]
    %v171 = vld [vmem:[#allocation5 + $0x388] sm:$0xff]
    %v172 = vld [vmem:[#allocation5 + $0x390] sm:$0xff]
    %v173 = vld [vmem:[#allocation5 + $0x398] sm:$0xff]
    %v174 = vld [vmem:[#allocation5 + $0x3a0] sm:$0xff]
    %v175 = vld [vmem:[#allocation5 + $0x3a8] sm:$0xff]
    %v176 = vld [vmem:[#allocation5 + $0x3b0] sm:$0xff]
    %v177 = vld [vmem:[#allocation5 + $0x3b8] sm:$0xff]
    %v178 = vld [vmem:[#allocation5 + $0x3c0] sm:$0xff]
    %v179 = vld [vmem:[#allocation5 + $0x3c8] sm:$0xff]
    %v180 = vld [vmem:[#allocation5 + $0x3d0] sm:$0xff]
    %v181 = vld [vmem:[#allocation5 + $0x3d8] sm:$0xff]
    %v182 = vld [vmem:[#allocation5 + $0x3e0] sm:$0xff]
    %v183 = vld [vmem:[#allocation5 + $0x3e8] sm:$0xff]
    %v184 = vld [vmem:[#allocation5 + $0x3f0] sm:$0xff]
    %v185 = vld [vmem:[#allocation5 + $0x3f8] sm:$0xff]
    %v187 = vcombine.high %v57, %v57
    %v189 = vunpack.c.l.s4 1966171168
    %v190 = vunpack.c.0.s8 %v189
    %v191 = vlaneseq
    %v192 = vshrl.u32 %v191, 7
    %v193 = vsub.s32 %v190, %v192
    %v194 = vrot.slane %v57, %v193
    %v196 = vunpack.c.l.s4 1966171168
    %v197 = vunpack.c.0.s8 %v196
    %v198 = vlaneseq
    %v199 = vshrl.u32 %v198, 7
    %v200 = vsub.s32 %v197, %v199
    %v201 = vrot.slane %v187, %v200
    %v202 = vcombine.high %v194, %v194
    %v203 = vcombine.high %v201, %v201
    %v205 = vunpack.c.l.s4 1966171168
    %v206 = vunpack.c.0.s8 %v205
    %v207 = vlaneseq
    %v208 = vshrl.u32 %v207, 7
    %v209 = vsub.s32 %v206, %v208
    %v210 = vrot.slane %v194, %v209
    %v212 = vunpack.c.l.s4 1966171168
    %v213 = vunpack.c.0.s8 %v212
    %v214 = vlaneseq
    %v215 = vshrl.u32 %v214, 7
    %v216 = vsub.s32 %v213, %v215
    %v217 = vrot.slane %v201, %v216
    %v219 = vunpack.c.l.s4 1966171168
    %v220 = vunpack.c.0.s8 %v219
    %v221 = vlaneseq
    %v222 = vshrl.u32 %v221, 7
    %v223 = vsub.s32 %v220, %v222
    %v224 = vrot.slane %v202, %v223
    %v226 = vunpack.c.l.s4 1966171168
    %v227 = vunpack.c.0.s8 %v226
    %v228 = vlaneseq
    %v229 = vshrl.u32 %v228, 7
    %v230 = vsub.s32 %v227, %v229
    %v231 = vrot.slane %v203, %v230
    %v232 = vcombine.high %v210, %v210
    %v233 = vcombine.high %v217, %v217
    %v234 = vcombine.high %v224, %v224
    %v235 = vcombine.high %v231, %v231
    %244 = vmatprep.subr.mxu0 0.0
    %245 = vmatpush1.xpose.msra.mxu0 %v58
    %246 = vmatprep.subr.mxu0 0.0
    %247 = vmatpush1.xpose.msra.mxu0 %v59
    %248 = vmatprep.subr.mxu0 0.0
    %249 = vmatpush1.xpose.msra.mxu0 %v60
    %250 = vmatprep.subr.mxu0 0.0
    %251 = vmatpush1.xpose.msra.mxu0 %v61
    %252 = vmatprep.subr.mxu0 0.0
    %253 = vmatpush1.xpose.msra.mxu0 %v62
    %254 = vmatprep.subr.mxu0 0.0
    %255 = vmatpush1.xpose.msra.mxu0 %v63
    %256 = vmatprep.subr.mxu0 0.0
    %257 = vmatpush1.xpose.msra.mxu0 %v64
    %258 = vmatprep.subr.mxu0 0.0
    %259 = vmatpush1.xpose.msra.mxu0 %v65
    %260 = vmatprep.subr.mxu0 0.0
    %261 = vmatpush1.xpose.msra.mxu0 %v66
    %262 = vmatprep.subr.mxu0 0.0
    %263 = vmatpush1.xpose.msra.mxu0 %v67
    %264 = vmatprep.subr.mxu0 0.0
    %265 = vmatpush1.xpose.msra.mxu0 %v68
    %266 = vmatprep.subr.mxu0 0.0
    %267 = vmatpush1.xpose.msra.mxu0 %v69
    %268 = vmatprep.subr.mxu0 0.0
    %269 = vmatpush1.xpose.msra.mxu0 %v70
    %270 = vmatprep.subr.mxu0 0.0
    %271 = vmatpush1.xpose.msra.mxu0 %v71
    %272 = vmatprep.subr.mxu0 0.0
    %273 = vmatpush1.xpose.msra.mxu0 %v72
    %274 = vmatprep.subr.mxu0 0.0
    %275 = vmatpush1.xpose.msra.mxu0 %v73
    %276 = vmatprep.subr.mxu0 0.0
    %277 = vmatpush1.xpose.msra.mxu0 0.0
    %278 = vmatprep.subr.mxu0 0.0
    %279 = vmatpush1.xpose.msra.mxu0 0.0
    %280 = vmatprep.subr.mxu0 0.0
    %281 = vmatpush1.xpose.msra.mxu0 0.0
    %282 = vmatprep.subr.mxu0 0.0
    %283 = vmatpush1.xpose.msra.mxu0 0.0
    %284 = vmatprep.subr.mxu0 0.0
    %285 = vmatpush1.xpose.msra.mxu0 0.0
    %286 = vmatprep.subr.mxu0 0.0
    %287 = vmatpush1.xpose.msra.mxu0 0.0
    %288 = vmatprep.subr.mxu0 0.0
    %289 = vmatpush1.xpose.msra.mxu0 0.0
    %290 = vmatprep.subr.mxu0 0.0
    %291 = vmatpush1.xpose.msra.mxu0 0.0
    %292 = vmatprep.subr.mxu0 0.0
    %293 = vmatpush1.xpose.msra.mxu0 0.0
    %294 = vmatprep.subr.mxu0 0.0
    %295 = vmatpush1.xpose.msra.mxu0 0.0
    %296 = vmatprep.subr.mxu0 0.0
    %297 = vmatpush1.xpose.msra.mxu0 0.0
    %298 = vmatprep.subr.mxu0 0.0
    %299 = vmatpush1.xpose.msra.mxu0 0.0
    %300 = vmatprep.subr.mxu0 0.0
    %301 = vmatpush1.xpose.msra.mxu0 0.0
    %302 = vmatprep.subr.mxu0 0.0
    %303 = vmatpush1.xpose.msra.mxu0 0.0
    %304 = vmatprep.subr.mxu0 0.0
    %305 = vmatpush1.xpose.msra.mxu0 0.0
    %306 = vmatprep.subr.mxu0 0.0
    %307 = vmatpush1.xpose.msra.mxu0 0.0
    %308 = vmatprep.mubr.f32.mxu0 0.0
    %309 = vmatmul.mubr.f32.gmra.mrb[0].mxu0 %v210
    %v310 = vpop.f32.mrb[0].mxu0
    %v311 = vadd.f32 0.0, %v310
    %v312 = vpop.f32.mrb[0].mxu0
    %313 = vdwg.mxu0
    %314 = vmatprep.subr.mxu0 0.0
    %315 = vmatpush1.xpose.msra.mxu0 %v74
    %316 = vmatprep.subr.mxu0 0.0
    %317 = vmatpush1.xpose.msra.mxu0 %v75
    %318 = vmatprep.subr.mxu0 0.0
    %319 = vmatpush1.xpose.msra.mxu0 %v76
    %320 = vmatprep.subr.mxu0 0.0
    %321 = vmatpush1.xpose.msra.mxu0 %v77
    %322 = vmatprep.subr.mxu0 0.0
    %323 = vmatpush1.xpose.msra.mxu0 %v78
    %324 = vmatprep.subr.mxu0 0.0
    %325 = vmatpush1.xpose.msra.mxu0 %v79
    %326 = vmatprep.subr.mxu0 0.0
    %327 = vmatpush1.xpose.msra.mxu0 %v80
    %328 = vmatprep.subr.mxu0 0.0
    %329 = vmatpush1.xpose.msra.mxu0 %v81
    %330 = vmatprep.subr.mxu0 0.0
    %331 = vmatpush1.xpose.msra.mxu0 %v82
    %332 = vmatprep.subr.mxu0 0.0
    %333 = vmatpush1.xpose.msra.mxu0 %v83
    %334 = vmatprep.subr.mxu0 0.0
    %335 = vmatpush1.xpose.msra.mxu0 %v84
    %336 = vmatprep.subr.mxu0 0.0
    %337 = vmatpush1.xpose.msra.mxu0 %v85
    %338 = vmatprep.subr.mxu0 0.0
    %339 = vmatpush1.xpose.msra.mxu0 %v86
    %340 = vmatprep.subr.mxu0 0.0
    %341 = vmatpush1.xpose.msra.mxu0 %v87
    %342 = vmatprep.subr.mxu0 0.0
    %343 = vmatpush1.xpose.msra.mxu0 %v88
    %344 = vmatprep.subr.mxu0 0.0
    %345 = vmatpush1.xpose.msra.mxu0 %v89
    %346 = vmatprep.subr.mxu0 0.0
    %347 = vmatpush1.xpose.msra.mxu0 0.0
    %348 = vmatprep.subr.mxu0 0.0
    %349 = vmatpush1.xpose.msra.mxu0 0.0
    %350 = vmatprep.subr.mxu0 0.0
    %351 = vmatpush1.xpose.msra.mxu0 0.0
    %352 = vmatprep.subr.mxu0 0.0
    %353 = vmatpush1.xpose.msra.mxu0 0.0
    %354 = vmatprep.subr.mxu0 0.0
    %355 = vmatpush1.xpose.msra.mxu0 0.0
    %356 = vmatprep.subr.mxu0 0.0
    %357 = vmatpush1.xpose.msra.mxu0 0.0
    %358 = vmatprep.subr.mxu0 0.0
    %359 = vmatpush1.xpose.msra.mxu0 0.0
    %360 = vmatprep.subr.mxu0 0.0
    %361 = vmatpush1.xpose.msra.mxu0 0.0
    %362 = vmatprep.subr.mxu0 0.0
    %363 = vmatpush1.xpose.msra.mxu0 0.0
    %364 = vmatprep.subr.mxu0 0.0
    %365 = vmatpush1.xpose.msra.mxu0 0.0
    %366 = vmatprep.subr.mxu0 0.0
    %367 = vmatpush1.xpose.msra.mxu0 0.0
    %368 = vmatprep.subr.mxu0 0.0
    %369 = vmatpush1.xpose.msra.mxu0 0.0
    %370 = vmatprep.subr.mxu0 0.0
    %371 = vmatpush1.xpose.msra.mxu0 0.0
    %372 = vmatprep.subr.mxu0 0.0
    %373 = vmatpush1.xpose.msra.mxu0 0.0
    %374 = vmatprep.subr.mxu0 0.0
    %375 = vmatpush1.xpose.msra.mxu0 0.0
    %376 = vmatprep.subr.mxu0 0.0
    %377 = vmatpush1.xpose.msra.mxu0 0.0
    %378 = vmatprep.mubr.f32.mxu0 0.0
    %379 = vmatmul.mubr.f32.gmra.mrb[0].mxu0 %v224
    %v380 = vpop.f32.mrb[0].mxu0
    %v381 = vadd.f32 0.0, %v380
    %v382 = vpop.f32.mrb[0].mxu0
    %383 = vdwg.mxu0
    %384 = vmatprep.subr.mxu0 0.0
    %385 = vmatpush1.xpose.msra.mxu0 %v90
    %386 = vmatprep.subr.mxu0 0.0
    %387 = vmatpush1.xpose.msra.mxu0 %v91
    %388 = vmatprep.subr.mxu0 0.0
    %389 = vmatpush1.xpose.msra.mxu0 %v92
    %390 = vmatprep.subr.mxu0 0.0
    %391 = vmatpush1.xpose.msra.mxu0 %v93
    %392 = vmatprep.subr.mxu0 0.0
    %393 = vmatpush1.xpose.msra.mxu0 %v94
    %394 = vmatprep.subr.mxu0 0.0
    %395 = vmatpush1.xpose.msra.mxu0 %v95
    %396 = vmatprep.subr.mxu0 0.0
    %397 = vmatpush1.xpose.msra.mxu0 %v96
    %398 = vmatprep.subr.mxu0 0.0
    %399 = vmatpush1.xpose.msra.mxu0 %v97
    %400 = vmatprep.subr.mxu0 0.0
    %401 = vmatpush1.xpose.msra.mxu0 %v98
    %402 = vmatprep.subr.mxu0 0.0
    %403 = vmatpush1.xpose.msra.mxu0 %v99
    %404 = vmatprep.subr.mxu0 0.0
    %405 = vmatpush1.xpose.msra.mxu0 %v100
    %406 = vmatprep.subr.mxu0 0.0
    %407 = vmatpush1.xpose.msra.mxu0 %v101
    %408 = vmatprep.subr.mxu0 0.0
    %409 = vmatpush1.xpose.msra.mxu0 %v102
    %410 = vmatprep.subr.mxu0 0.0
    %411 = vmatpush1.xpose.msra.mxu0 %v103
    %412 = vmatprep.subr.mxu0 0.0
    %413 = vmatpush1.xpose.msra.mxu0 %v104
    %414 = vmatprep.subr.mxu0 0.0
    %415 = vmatpush1.xpose.msra.mxu0 %v105
    %416 = vmatprep.subr.mxu0 0.0
    %417 = vmatpush1.xpose.msra.mxu0 0.0
    %418 = vmatprep.subr.mxu0 0.0
    %419 = vmatpush1.xpose.msra.mxu0 0.0
    %420 = vmatprep.subr.mxu0 0.0
    %421 = vmatpush1.xpose.msra.mxu0 0.0
    %422 = vmatprep.subr.mxu0 0.0
    %423 = vmatpush1.xpose.msra.mxu0 0.0
    %424 = vmatprep.subr.mxu0 0.0
    %425 = vmatpush1.xpose.msra.mxu0 0.0
    %426 = vmatprep.subr.mxu0 0.0
    %427 = vmatpush1.xpose.msra.mxu0 0.0
    %428 = vmatprep.subr.mxu0 0.0
    %429 = vmatpush1.xpose.msra.mxu0 0.0
    %430 = vmatprep.subr.mxu0 0.0
    %431 = vmatpush1.xpose.msra.mxu0 0.0
    %432 = vmatprep.subr.mxu0 0.0
    %433 = vmatpush1.xpose.msra.mxu0 0.0
    %434 = vmatprep.subr.mxu0 0.0
    %435 = vmatpush1.xpose.msra.mxu0 0.0
    %436 = vmatprep.subr.mxu0 0.0
    %437 = vmatpush1.xpose.msra.mxu0 0.0
    %438 = vmatprep.subr.mxu0 0.0
    %439 = vmatpush1.xpose.msra.mxu0 0.0
    %440 = vmatprep.subr.mxu0 0.0
    %441 = vmatpush1.xpose.msra.mxu0 0.0
    %442 = vmatprep.subr.mxu0 0.0
    %443 = vmatpush1.xpose.msra.mxu0 0.0
    %444 = vmatprep.subr.mxu0 0.0
    %445 = vmatpush1.xpose.msra.mxu0 0.0
    %446 = vmatprep.subr.mxu0 0.0
    %447 = vmatpush1.xpose.msra.mxu0 0.0
    %448 = vmatprep.mubr.f32.mxu0 0.0
    %449 = vmatmul.mubr.f32.gmra.mrb[0].mxu0 %v232
    %v450 = vpop.f32.mrb[0].mxu0
    %v451 = vadd.f32 0.0, %v450
    %v452 = vpop.f32.mrb[0].mxu0
    %453 = vdwg.mxu0
    %454 = vmatprep.subr.mxu0 0.0
    %455 = vmatpush1.xpose.msra.mxu0 %v106
    %456 = vmatprep.subr.mxu0 0.0
    %457 = vmatpush1.xpose.msra.mxu0 %v107
    %458 = vmatprep.subr.mxu0 0.0
    %459 = vmatpush1.xpose.msra.mxu0 %v108
    %460 = vmatprep.subr.mxu0 0.0
    %461 = vmatpush1.xpose.msra.mxu0 %v109
    %462 = vmatprep.subr.mxu0 0.0
    %463 = vmatpush1.xpose.msra.mxu0 %v110
    %464 = vmatprep.subr.mxu0 0.0
    %465 = vmatpush1.xpose.msra.mxu0 %v111
    %466 = vmatprep.subr.mxu0 0.0
    %467 = vmatpush1.xpose.msra.mxu0 %v112
    %468 = vmatprep.subr.mxu0 0.0
    %469 = vmatpush1.xpose.msra.mxu0 %v113
    %470 = vmatprep.subr.mxu0 0.0
    %471 = vmatpush1.xpose.msra.mxu0 %v114
    %472 = vmatprep.subr.mxu0 0.0
    %473 = vmatpush1.xpose.msra.mxu0 %v115
    %474 = vmatprep.subr.mxu0 0.0
    %475 = vmatpush1.xpose.msra.mxu0 %v116
    %476 = vmatprep.subr.mxu0 0.0
    %477 = vmatpush1.xpose.msra.mxu0 %v117
    %478 = vmatprep.subr.mxu0 0.0
    %479 = vmatpush1.xpose.msra.mxu0 %v118
    %480 = vmatprep.subr.mxu0 0.0
    %481 = vmatpush1.xpose.msra.mxu0 %v119
    %482 = vmatprep.subr.mxu0 0.0
    %483 = vmatpush1.xpose.msra.mxu0 %v120
    %484 = vmatprep.subr.mxu0 0.0
    %485 = vmatpush1.xpose.msra.mxu0 %v121
    %486 = vmatprep.subr.mxu0 0.0
    %487 = vmatpush1.xpose.msra.mxu0 0.0
    %488 = vmatprep.subr.mxu0 0.0
    %489 = vmatpush1.xpose.msra.mxu0 0.0
    %490 = vmatprep.subr.mxu0 0.0
    %491 = vmatpush1.xpose.msra.mxu0 0.0
    %492 = vmatprep.subr.mxu0 0.0
    %493 = vmatpush1.xpose.msra.mxu0 0.0
    %494 = vmatprep.subr.mxu0 0.0
    %495 = vmatpush1.xpose.msra.mxu0 0.0
    %496 = vmatprep.subr.mxu0 0.0
    %497 = vmatpush1.xpose.msra.mxu0 0.0
    %498 = vmatprep.subr.mxu0 0.0
    %499 = vmatpush1.xpose.msra.mxu0 0.0
    %500 = vmatprep.subr.mxu0 0.0
    %501 = vmatpush1.xpose.msra.mxu0 0.0
    %502 = vmatprep.subr.mxu0 0.0
    %503 = vmatpush1.xpose.msra.mxu0 0.0
    %504 = vmatprep.subr.mxu0 0.0
    %505 = vmatpush1.xpose.msra.mxu0 0.0
    %506 = vmatprep.subr.mxu0 0.0
    %507 = vmatpush1.xpose.msra.mxu0 0.0
    %508 = vmatprep.subr.mxu0 0.0
    %509 = vmatpush1.xpose.msra.mxu0 0.0
    %510 = vmatprep.subr.mxu0 0.0
    %511 = vmatpush1.xpose.msra.mxu0 0.0
    %512 = vmatprep.subr.mxu0 0.0
    %513 = vmatpush1.xpose.msra.mxu0 0.0
    %514 = vmatprep.subr.mxu0 0.0
    %515 = vmatpush1.xpose.msra.mxu0 0.0
    %516 = vmatprep.subr.mxu0 0.0
    %517 = vmatpush1.xpose.msra.mxu0 0.0
    %518 = vmatprep.mubr.f32.mxu0 0.0
    %519 = vmatmul.mubr.f32.gmra.mrb[0].mxu0 %v234
    %v520 = vpop.f32.mrb[0].mxu0
    %v521 = vadd.f32 0.0, %v520
    %v522 = vpop.f32.mrb[0].mxu0
    %523 = vdwg.mxu0
    %524 = vmatprep.subr.mxu0 0.0
    %525 = vmatpush1.xpose.msra.mxu0 %v122
    %526 = vmatprep.subr.mxu0 0.0
    %527 = vmatpush1.xpose.msra.mxu0 %v123
    %528 = vmatprep.subr.mxu0 0.0
    %529 = vmatpush1.xpose.msra.mxu0 %v124
    %530 = vmatprep.subr.mxu0 0.0
    %531 = vmatpush1.xpose.msra.mxu0 %v125
    %532 = vmatprep.subr.mxu0 0.0
    %533 = vmatpush1.xpose.msra.mxu0 %v126
    %534 = vmatprep.subr.mxu0 0.0
    %535 = vmatpush1.xpose.msra.mxu0 %v127
    %536 = vmatprep.subr.mxu0 0.0
    %537 = vmatpush1.xpose.msra.mxu0 %v128
    %538 = vmatprep.subr.mxu0 0.0
    %539 = vmatpush1.xpose.msra.mxu0 %v129
    %540 = vmatprep.subr.mxu0 0.0
    %541 = vmatpush1.xpose.msra.mxu0 %v130
    %542 = vmatprep.subr.mxu0 0.0
    %543 = vmatpush1.xpose.msra.mxu0 %v131
    %544 = vmatprep.subr.mxu0 0.0
    %545 = vmatpush1.xpose.msra.mxu0 %v132
    %546 = vmatprep.subr.mxu0 0.0
    %547 = vmatpush1.xpose.msra.mxu0 %v133
    %548 = vmatprep.subr.mxu0 0.0
    %549 = vmatpush1.xpose.msra.mxu0 %v134
    %550 = vmatprep.subr.mxu0 0.0
    %551 = vmatpush1.xpose.msra.mxu0 %v135
    %552 = vmatprep.subr.mxu0 0.0
    %553 = vmatpush1.xpose.msra.mxu0 %v136
    %554 = vmatprep.subr.mxu0 0.0
    %555 = vmatpush1.xpose.msra.mxu0 %v137
    %556 = vmatprep.subr.mxu0 0.0
    %557 = vmatpush1.xpose.msra.mxu0 0.0
    %558 = vmatprep.subr.mxu0 0.0
    %559 = vmatpush1.xpose.msra.mxu0 0.0
    %560 = vmatprep.subr.mxu0 0.0
    %561 = vmatpush1.xpose.msra.mxu0 0.0
    %562 = vmatprep.subr.mxu0 0.0
    %563 = vmatpush1.xpose.msra.mxu0 0.0
    %564 = vmatprep.subr.mxu0 0.0
    %565 = vmatpush1.xpose.msra.mxu0 0.0
    %566 = vmatprep.subr.mxu0 0.0
    %567 = vmatpush1.xpose.msra.mxu0 0.0
    %568 = vmatprep.subr.mxu0 0.0
    %569 = vmatpush1.xpose.msra.mxu0 0.0
    %570 = vmatprep.subr.mxu0 0.0
    %571 = vmatpush1.xpose.msra.mxu0 0.0
    %572 = vmatprep.subr.mxu0 0.0
    %573 = vmatpush1.xpose.msra.mxu0 0.0
    %574 = vmatprep.subr.mxu0 0.0
    %575 = vmatpush1.xpose.msra.mxu0 0.0
    %576 = vmatprep.subr.mxu0 0.0
    %577 = vmatpush1.xpose.msra.mxu0 0.0
    %578 = vmatprep.subr.mxu0 0.0
    %579 = vmatpush1.xpose.msra.mxu0 0.0
    %580 = vmatprep.subr.mxu0 0.0
    %581 = vmatpush1.xpose.msra.mxu0 0.0
    %582 = vmatprep.subr.mxu0 0.0
    %583 = vmatpush1.xpose.msra.mxu0 0.0
    %584 = vmatprep.subr.mxu0 0.0
    %585 = vmatpush1.xpose.msra.mxu0 0.0
    %586 = vmatprep.subr.mxu0 0.0
    %587 = vmatpush1.xpose.msra.mxu0 0.0
    %588 = vmatprep.mubr.f32.mxu0 0.0
    %589 = vmatmul.mubr.f32.gmra.mrb[0].mxu0 %v217
    %v590 = vpop.f32.mrb[0].mxu0
    %v591 = vadd.f32 0.0, %v590
    %v592 = vpop.f32.mrb[0].mxu0
    %593 = vdwg.mxu0
    %594 = vmatprep.subr.mxu0 0.0
    %595 = vmatpush1.xpose.msra.mxu0 %v138
    %596 = vmatprep.subr.mxu0 0.0
    %597 = vmatpush1.xpose.msra.mxu0 %v139
    %598 = vmatprep.subr.mxu0 0.0
    %599 = vmatpush1.xpose.msra.mxu0 %v140
    %600 = vmatprep.subr.mxu0 0.0
    %601 = vmatpush1.xpose.msra.mxu0 %v141
    %602 = vmatprep.subr.mxu0 0.0
    %603 = vmatpush1.xpose.msra.mxu0 %v142
    %604 = vmatprep.subr.mxu0 0.0
    %605 = vmatpush1.xpose.msra.mxu0 %v143
    %606 = vmatprep.subr.mxu0 0.0
    %607 = vmatpush1.xpose.msra.mxu0 %v144
    %608 = vmatprep.subr.mxu0 0.0
    %609 = vmatpush1.xpose.msra.mxu0 %v145
    %610 = vmatprep.subr.mxu0 0.0
    %611 = vmatpush1.xpose.msra.mxu0 %v146
    %612 = vmatprep.subr.mxu0 0.0
    %613 = vmatpush1.xpose.msra.mxu0 %v147
    %614 = vmatprep.subr.mxu0 0.0
    %615 = vmatpush1.xpose.msra.mxu0 %v148
    %616 = vmatprep.subr.mxu0 0.0
    %617 = vmatpush1.xpose.msra.mxu0 %v149
    %618 = vmatprep.subr.mxu0 0.0
    %619 = vmatpush1.xpose.msra.mxu0 %v150
    %620 = vmatprep.subr.mxu0 0.0
    %621 = vmatpush1.xpose.msra.mxu0 %v151
    %622 = vmatprep.subr.mxu0 0.0
    %623 = vmatpush1.xpose.msra.mxu0 %v152
    %624 = vmatprep.subr.mxu0 0.0
    %625 = vmatpush1.xpose.msra.mxu0 %v153
    %626 = vmatprep.subr.mxu0 0.0
    %627 = vmatpush1.xpose.msra.mxu0 0.0
    %628 = vmatprep.subr.mxu0 0.0
    %629 = vmatpush1.xpose.msra.mxu0 0.0
    %630 = vmatprep.subr.mxu0 0.0
    %631 = vmatpush1.xpose.msra.mxu0 0.0
    %632 = vmatprep.subr.mxu0 0.0
    %633 = vmatpush1.xpose.msra.mxu0 0.0
    %634 = vmatprep.subr.mxu0 0.0
    %635 = vmatpush1.xpose.msra.mxu0 0.0
    %636 = vmatprep.subr.mxu0 0.0
    %637 = vmatpush1.xpose.msra.mxu0 0.0
    %638 = vmatprep.subr.mxu0 0.0
    %639 = vmatpush1.xpose.msra.mxu0 0.0
    %640 = vmatprep.subr.mxu0 0.0
    %641 = vmatpush1.xpose.msra.mxu0 0.0
    %642 = vmatprep.subr.mxu0 0.0
    %643 = vmatpush1.xpose.msra.mxu0 0.0
    %644 = vmatprep.subr.mxu0 0.0
    %645 = vmatpush1.xpose.msra.mxu0 0.0
    %646 = vmatprep.subr.mxu0 0.0
    %647 = vmatpush1.xpose.msra.mxu0 0.0
    %648 = vmatprep.subr.mxu0 0.0
    %649 = vmatpush1.xpose.msra.mxu0 0.0
    %650 = vmatprep.subr.mxu0 0.0
    %651 = vmatpush1.xpose.msra.mxu0 0.0
    %652 = vmatprep.subr.mxu0 0.0
    %653 = vmatpush1.xpose.msra.mxu0 0.0
    %654 = vmatprep.subr.mxu0 0.0
    %655 = vmatpush1.xpose.msra.mxu0 0.0
    %656 = vmatprep.subr.mxu0 0.0
    %657 = vmatpush1.xpose.msra.mxu0 0.0
    %658 = vmatprep.mubr.f32.mxu0 0.0
    %659 = vmatmul.mubr.f32.gmra.mrb[0].mxu0 %v231
    %v660 = vpop.f32.mrb[0].mxu0
    %v661 = vadd.f32 0.0, %v660
    %v662 = vpop.f32.mrb[0].mxu0
    %663 = vdwg.mxu0
    %664 = vmatprep.subr.mxu0 0.0
    %665 = vmatpush1.xpose.msra.mxu0 %v154
    %666 = vmatprep.subr.mxu0 0.0
    %667 = vmatpush1.xpose.msra.mxu0 %v155
    %668 = vmatprep.subr.mxu0 0.0
    %669 = vmatpush1.xpose.msra.mxu0 %v156
    %670 = vmatprep.subr.mxu0 0.0
    %671 = vmatpush1.xpose.msra.mxu0 %v157
    %672 = vmatprep.subr.mxu0 0.0
    %673 = vmatpush1.xpose.msra.mxu0 %v158
    %674 = vmatprep.subr.mxu0 0.0
    %675 = vmatpush1.xpose.msra.mxu0 %v159
    %676 = vmatprep.subr.mxu0 0.0
    %677 = vmatpush1.xpose.msra.mxu0 %v160
    %678 = vmatprep.subr.mxu0 0.0
    %679 = vmatpush1.xpose.msra.mxu0 %v161
    %680 = vmatprep.subr.mxu0 0.0
    %681 = vmatpush1.xpose.msra.mxu0 %v162
    %682 = vmatprep.subr.mxu0 0.0
    %683 = vmatpush1.xpose.msra.mxu0 %v163
    %684 = vmatprep.subr.mxu0 0.0
    %685 = vmatpush1.xpose.msra.mxu0 %v164
    %686 = vmatprep.subr.mxu0 0.0
    %687 = vmatpush1.xpose.msra.mxu0 %v165
    %688 = vmatprep.subr.mxu0 0.0
    %689 = vmatpush1.xpose.msra.mxu0 %v166
    %690 = vmatprep.subr.mxu0 0.0
    %691 = vmatpush1.xpose.msra.mxu0 %v167
    %692 = vmatprep.subr.mxu0 0.0
    %693 = vmatpush1.xpose.msra.mxu0 %v168
    %694 = vmatprep.subr.mxu0 0.0
    %695 = vmatpush1.xpose.msra.mxu0 %v169
    %696 = vmatprep.subr.mxu0 0.0
    %697 = vmatpush1.xpose.msra.mxu0 0.0
    %698 = vmatprep.subr.mxu0 0.0
    %699 = vmatpush1.xpose.msra.mxu0 0.0
    %700 = vmatprep.subr.mxu0 0.0
    %701 = vmatpush1.xpose.msra.mxu0 0.0
    %702 = vmatprep.subr.mxu0 0.0
    %703 = vmatpush1.xpose.msra.mxu0 0.0
    %704 = vmatprep.subr.mxu0 0.0
    %705 = vmatpush1.xpose.msra.mxu0 0.0
    %706 = vmatprep.subr.mxu0 0.0
    %707 = vmatpush1.xpose.msra.mxu0 0.0
    %708 = vmatprep.subr.mxu0 0.0
    %709 = vmatpush1.xpose.msra.mxu0 0.0
    %710 = vmatprep.subr.mxu0 0.0
    %711 = vmatpush1.xpose.msra.mxu0 0.0
    %712 = vmatprep.subr.mxu0 0.0
    %713 = vmatpush1.xpose.msra.mxu0 0.0
    %714 = vmatprep.subr.mxu0 0.0
    %715 = vmatpush1.xpose.msra.mxu0 0.0
    %716 = vmatprep.subr.mxu0 0.0
    %717 = vmatpush1.xpose.msra.mxu0 0.0
    %718 = vmatprep.subr.mxu0 0.0
    %719 = vmatpush1.xpose.msra.mxu0 0.0
    %720 = vmatprep.subr.mxu0 0.0
    %721 = vmatpush1.xpose.msra.mxu0 0.0
    %722 = vmatprep.subr.mxu0 0.0
    %723 = vmatpush1.xpose.msra.mxu0 0.0
    %724 = vmatprep.subr.mxu0 0.0
    %725 = vmatpush1.xpose.msra.mxu0 0.0
    %726 = vmatprep.subr.mxu0 0.0
    %727 = vmatpush1.xpose.msra.mxu0 0.0
    %728 = vmatprep.mubr.f32.mxu0 0.0
    %729 = vmatmul.mubr.f32.gmra.mrb[0].mxu0 %v233
    %v730 = vpop.f32.mrb[0].mxu0
    %v731 = vadd.f32 0.0, %v730
    %v732 = vpop.f32.mrb[0].mxu0
    %733 = vdwg.mxu0
    %734 = vmatprep.subr.mxu0 0.0
    %735 = vmatpush1.xpose.msra.mxu0 %v170
    %736 = vmatprep.subr.mxu0 0.0
    %737 = vmatpush1.xpose.msra.mxu0 %v171
    %738 = vmatprep.subr.mxu0 0.0
    %739 = vmatpush1.xpose.msra.mxu0 %v172
    %740 = vmatprep.subr.mxu0 0.0
    %741 = vmatpush1.xpose.msra.mxu0 %v173
    %742 = vmatprep.subr.mxu0 0.0
    %743 = vmatpush1.xpose.msra.mxu0 %v174
    %744 = vmatprep.subr.mxu0 0.0
    %745 = vmatpush1.xpose.msra.mxu0 %v175
    %746 = vmatprep.subr.mxu0 0.0
    %747 = vmatpush1.xpose.msra.mxu0 %v176
    %748 = vmatprep.subr.mxu0 0.0
    %749 = vmatpush1.xpose.msra.mxu0 %v177
    %750 = vmatprep.subr.mxu0 0.0
    %751 = vmatpush1.xpose.msra.mxu0 %v178
    %752 = vmatprep.subr.mxu0 0.0
    %753 = vmatpush1.xpose.msra.mxu0 %v179
    %754 = vmatprep.subr.mxu0 0.0
    %755 = vmatpush1.xpose.msra.mxu0 %v180
    %756 = vmatprep.subr.mxu0 0.0
    %757 = vmatpush1.xpose.msra.mxu0 %v181
    %758 = vmatprep.subr.mxu0 0.0
    %759 = vmatpush1.xpose.msra.mxu0 %v182
    %760 = vmatprep.subr.mxu0 0.0
    %761 = vmatpush1.xpose.msra.mxu0 %v183
    %762 = vmatprep.subr.mxu0 0.0
    %763 = vmatpush1.xpose.msra.mxu0 %v184
    %764 = vmatprep.subr.mxu0 0.0
    %765 = vmatpush1.xpose.msra.mxu0 %v185
    %766 = vmatprep.subr.mxu0 0.0
    %767 = vmatpush1.xpose.msra.mxu0 0.0
    %768 = vmatprep.subr.mxu0 0.0
    %769 = vmatpush1.xpose.msra.mxu0 0.0
    %770 = vmatprep.subr.mxu0 0.0
    %771 = vmatpush1.xpose.msra.mxu0 0.0
    %772 = vmatprep.subr.mxu0 0.0
    %773 = vmatpush1.xpose.msra.mxu0 0.0
    %774 = vmatprep.subr.mxu0 0.0
    %775 = vmatpush1.xpose.msra.mxu0 0.0
    %776 = vmatprep.subr.mxu0 0.0
    %777 = vmatpush1.xpose.msra.mxu0 0.0
    %778 = vmatprep.subr.mxu0 0.0
    %779 = vmatpush1.xpose.msra.mxu0 0.0
    %780 = vmatprep.subr.mxu0 0.0
    %781 = vmatpush1.xpose.msra.mxu0 0.0
    %782 = vmatprep.subr.mxu0 0.0
    %783 = vmatpush1.xpose.msra.mxu0 0.0
    %784 = vmatprep.subr.mxu0 0.0
    %785 = vmatpush1.xpose.msra.mxu0 0.0
    %786 = vmatprep.subr.mxu0 0.0
    %787 = vmatpush1.xpose.msra.mxu0 0.0
    %788 = vmatprep.subr.mxu0 0.0
    %789 = vmatpush1.xpose.msra.mxu0 0.0
    %790 = vmatprep.subr.mxu0 0.0
    %791 = vmatpush1.xpose.msra.mxu0 0.0
    %792 = vmatprep.subr.mxu0 0.0
    %793 = vmatpush1.xpose.msra.mxu0 0.0
    %794 = vmatprep.subr.mxu0 0.0
    %795 = vmatpush1.xpose.msra.mxu0 0.0
    %796 = vmatprep.subr.mxu0 0.0
    %797 = vmatpush1.xpose.msra.mxu0 0.0
    %798 = vmatprep.mubr.f32.mxu0 0.0
    %799 = vmatmul.mubr.f32.gmra.mrb[0].mxu0 %v235
    %v800 = vpop.f32.mrb[0].mxu0
    %v801 = vadd.f32 0.0, %v800
    %v802 = vpop.f32.mrb[0].mxu0
    %803 = vdwg.mxu0
    %v804 = vlaneseq
    %v805 = vand.u32 %v804, 127
    %vm806 = vcmp.lt.s32.totalorder %v805, 8
    %v807 = vsel %vm806, %v311, -1e+30
    %v808 = vsel %vm806, %v381, -1e+30
    %v809 = vsel %vm806, %v451, -1e+30
    %v810 = vsel %vm806, %v521, -1e+30
    %v811 = vsel %vm806, %v591, -1e+30
    %v812 = vsel %vm806, %v661, -1e+30
    %v813 = vsel %vm806, %v731, -1e+30
    %v814 = vsel %vm806, %v801, -1e+30
    %vm815 = vcmask 1040384
    %v816 = vsel %vm815, %v807, -inf
    %817 = vmax.xlane.f32.xlu0 %v816
    %v818 = vpop.xlane.xlu0 %817
    %v819 = vsel %vm815, %v808, -inf
    %820 = vmax.xlane.f32.xlu0 %v819
    %v821 = vpop.xlane.xlu0 %820
    %v822 = vsel %vm815, %v809, -inf
    %823 = vmax.xlane.f32.xlu0 %v822
    %v824 = vpop.xlane.xlu0 %823
    %v825 = vsel %vm815, %v810, -inf
    %826 = vmax.xlane.f32.xlu0 %v825
    %v827 = vpop.xlane.xlu0 %826
    %v828 = vsel %vm815, %v811, -inf
    %829 = vmax.xlane.f32.xlu0 %v828
    %v830 = vpop.xlane.xlu0 %829
    %v831 = vsel %vm815, %v812, -inf
    %832 = vmax.xlane.f32.xlu0 %v831
    %v833 = vpop.xlane.xlu0 %832
    %v834 = vsel %vm815, %v813, -inf
    %835 = vmax.xlane.f32.xlu0 %v834
    %v836 = vpop.xlane.xlu0 %835
    %v837 = vsel %vm815, %v814, -inf
    %838 = vmax.xlane.f32.xlu0 %v837
    %v839 = vpop.xlane.xlu0 %838
    %v840 = vsub.f32 %v807, %v818
    %v841 = vsub.f32 %v808, %v821
    %v842 = vsub.f32 %v809, %v824
    %v843 = vsub.f32 %v810, %v827
    %v844 = vsub.f32 %v811, %v830
    %v845 = vsub.f32 %v812, %v833
    %v846 = vsub.f32 %v813, %v836
    %v847 = vsub.f32 %v814, %v839
    %v848 = vmul.f32 %v840, 1.442695
    %v849 = vpow.pop %v848
    %v850 = vmul.f32 %v841, 1.442695
    %v851 = vpow.pop %v850
    %v852 = vmul.f32 %v842, 1.442695
    %v853 = vpow.pop %v852
    %v854 = vmul.f32 %v843, 1.442695
    %v855 = vpow.pop %v854
    %v856 = vmul.f32 %v844, 1.442695
    %v857 = vpow.pop %v856
    %v858 = vmul.f32 %v845, 1.442695
    %v859 = vpow.pop %v858
    %v860 = vmul.f32 %v846, 1.442695
    %v861 = vpow.pop %v860
    %v862 = vmul.f32 %v847, 1.442695
    %v863 = vpow.pop %v862
    %v864 = vsel %vm815, %v849, 0.0
    %865 = vadd.xlane.f32.xlu0 %v864
    %v866 = vpop.xlane.xlu0 %865
    %v867 = vsel %vm815, %v851, 0.0
    %868 = vadd.xlane.f32.xlu0 %v867
    %v869 = vpop.xlane.xlu0 %868
    %v870 = vsel %vm815, %v853, 0.0
    %871 = vadd.xlane.f32.xlu0 %v870
    %v872 = vpop.xlane.xlu0 %871
    %v873 = vsel %vm815, %v855, 0.0
    %874 = vadd.xlane.f32.xlu0 %v873
    %v875 = vpop.xlane.xlu0 %874
    %v876 = vsel %vm815, %v857, 0.0
    %877 = vadd.xlane.f32.xlu0 %v876
    %v878 = vpop.xlane.xlu0 %877
    %v879 = vsel %vm815, %v859, 0.0
    %880 = vadd.xlane.f32.xlu0 %v879
    %v881 = vpop.xlane.xlu0 %880
    %v882 = vsel %vm815, %v861, 0.0
    %883 = vadd.xlane.f32.xlu0 %v882
    %v884 = vpop.xlane.xlu0 %883
    %v885 = vsel %vm815, %v863, 0.0
    %886 = vadd.xlane.f32.xlu0 %v885
    %v887 = vpop.xlane.xlu0 %886
    %v888 = vrcp.pop %v866
    %v889 = vrcp.pop %v869
    %v890 = vrcp.pop %v872
    %v891 = vrcp.pop %v875
    %v892 = vrcp.pop %v878
    %v893 = vrcp.pop %v881
    %v894 = vrcp.pop %v884
    %v895 = vrcp.pop %v887
    %v896 = vmul.f32 %v849, %v888
    %v897 = vmul.f32 %v851, %v889
    %v898 = vmul.f32 %v853, %v890
    %v899 = vmul.f32 %v855, %v891
    %v900 = vmul.f32 %v857, %v892
    %v901 = vmul.f32 %v859, %v893
    %v902 = vmul.f32 %v861, %v894
    %v903 = vmul.f32 %v863, %v895
    %v912 = vrot.slane %v897, 7
    %vm913 = vcmask 1041409
    %v914 = vsel %vm913, %v912, %v896
    %v915 = vrot.slane %v898, 6
    %vm916 = vcmask 1042434
    %v917 = vsel %vm916, %v915, %v914
    %v918 = vrot.slane %v899, 5
    %vm919 = vcmask 1043459
    %v920 = vsel %vm919, %v918, %v917
    %v921 = vrot.slane %v900, 4
    %vm922 = vcmask 1044484
    %v923 = vsel %vm922, %v921, %v920
    %v924 = vrot.slane %v901, 3
    %vm925 = vcmask 1045509
    %v926 = vsel %vm925, %v924, %v923
    %v927 = vrot.slane %v902, 2
    %vm928 = vcmask 1046534
    %v929 = vsel %vm928, %v927, %v926
    %v930 = vrot.slane %v903, 1
    %vm931 = vcmask 1047559
    %v932 = vsel %vm931, %v930, %v929
    %934 = vst [vmem:[#allocation8] sm:$0xff] %v932
    %935 = vmatprep.subr.mxu0 0.0
    %936 = vmatpush1.msra.mxu0 %v58
    %937 = vmatprep.subr.mxu0 0.0
    %938 = vmatpush1.msra.mxu0 %v59
    %939 = vmatprep.subr.mxu0 0.0
    %940 = vmatpush1.msra.mxu0 %v60
    %941 = vmatprep.subr.mxu0 0.0
    %942 = vmatpush1.msra.mxu0 %v61
    %943 = vmatprep.subr.mxu0 0.0
    %944 = vmatpush1.msra.mxu0 %v62
    %945 = vmatprep.subr.mxu0 0.0
    %946 = vmatpush1.msra.mxu0 %v63
    %947 = vmatprep.subr.mxu0 0.0
    %948 = vmatpush1.msra.mxu0 %v64
    %949 = vmatprep.subr.mxu0 0.0
    %950 = vmatpush1.msra.mxu0 %v65
    %951 = vmatprep.subr.mxu0 0.0
    %952 = vmatpush1.msra.mxu0 %v66
    %953 = vmatprep.subr.mxu0 0.0
    %954 = vmatpush1.msra.mxu0 %v67
    %955 = vmatprep.subr.mxu0 0.0
    %956 = vmatpush1.msra.mxu0 %v68
    %957 = vmatprep.subr.mxu0 0.0
    %958 = vmatpush1.msra.mxu0 %v69
    %959 = vmatprep.subr.mxu0 0.0
    %960 = vmatpush1.msra.mxu0 %v70
    %961 = vmatprep.subr.mxu0 0.0
    %962 = vmatpush1.msra.mxu0 %v71
    %963 = vmatprep.subr.mxu0 0.0
    %964 = vmatpush1.msra.mxu0 %v72
    %965 = vmatprep.subr.mxu0 0.0
    %966 = vmatpush1.msra.mxu0 %v73
    %967 = vmatprep.subr.mxu0 0.0
    %968 = vmatpush1.msra.mxu0 0.0
    %969 = vmatprep.subr.mxu0 0.0
    %970 = vmatpush1.msra.mxu0 0.0
    %971 = vmatprep.subr.mxu0 0.0
    %972 = vmatpush1.msra.mxu0 0.0
    %973 = vmatprep.subr.mxu0 0.0
    %974 = vmatpush1.msra.mxu0 0.0
    %975 = vmatprep.subr.mxu0 0.0
    %976 = vmatpush1.msra.mxu0 0.0
    %977 = vmatprep.subr.mxu0 0.0
    %978 = vmatpush1.msra.mxu0 0.0
    %979 = vmatprep.subr.mxu0 0.0
    %980 = vmatpush1.msra.mxu0 0.0
    %981 = vmatprep.subr.mxu0 0.0
    %982 = vmatpush1.msra.mxu0 0.0
    %983 = vmatprep.subr.mxu0 0.0
    %984 = vmatpush1.msra.mxu0 0.0
    %985 = vmatprep.subr.mxu0 0.0
    %986 = vmatpush1.msra.mxu0 0.0
    %987 = vmatprep.subr.mxu0 0.0
    %988 = vmatpush1.msra.mxu0 0.0
    %989 = vmatprep.subr.mxu0 0.0
    %990 = vmatpush1.msra.mxu0 0.0
    %991 = vmatprep.subr.mxu0 0.0
    %992 = vmatpush1.msra.mxu0 0.0
    %993 = vmatprep.subr.mxu0 0.0
    %994 = vmatpush1.msra.mxu0 0.0
    %995 = vmatprep.subr.mxu0 0.0
    %996 = vmatpush1.msra.mxu0 0.0
    %997 = vmatprep.subr.mxu0 0.0
    %998 = vmatpush1.msra.mxu0 0.0
    %999 = vmatprep.mubr.f32.mxu0 0.0
    %1000 = vmatmul.mubr.f32.gmra.mrb[0].mxu0 %v896
    %v1001 = vpop.f32.mrb[0].mxu0
    %v1002 = vadd.f32 0.0, %v1001
    %v1003 = vpop.f32.mrb[0].mxu0
    %1004 = vdwg.mxu0
    %1005 = vmatprep.subr.mxu0 0.0
    %1006 = vmatpush1.msra.mxu0 %v74
    %1007 = vmatprep.subr.mxu0 0.0
    %1008 = vmatpush1.msra.mxu0 %v75
    %1009 = vmatprep.subr.mxu0 0.0
    %1010 = vmatpush1.msra.mxu0 %v76
    %1011 = vmatprep.subr.mxu0 0.0
    %1012 = vmatpush1.msra.mxu0 %v77
    %1013 = vmatprep.subr.mxu0 0.0
    %1014 = vmatpush1.msra.mxu0 %v78
    %1015 = vmatprep.subr.mxu0 0.0
    %1016 = vmatpush1.msra.mxu0 %v79
    %1017 = vmatprep.subr.mxu0 0.0
    %1018 = vmatpush1.msra.mxu0 %v80
    %1019 = vmatprep.subr.mxu0 0.0
    %1020 = vmatpush1.msra.mxu0 %v81
    %1021 = vmatprep.subr.mxu0 0.0
    %1022 = vmatpush1.msra.mxu0 %v82
    %1023 = vmatprep.subr.mxu0 0.0
    %1024 = vmatpush1.msra.mxu0 %v83
    %1025 = vmatprep.subr.mxu0 0.0
    %1026 = vmatpush1.msra.mxu0 %v84
    %1027 = vmatprep.subr.mxu0 0.0
    %1028 = vmatpush1.msra.mxu0 %v85
    %1029 = vmatprep.subr.mxu0 0.0
    %1030 = vmatpush1.msra.mxu0 %v86
    %1031 = vmatprep.subr.mxu0 0.0
    %1032 = vmatpush1.msra.mxu0 %v87
    %1033 = vmatprep.subr.mxu0 0.0
    %1034 = vmatpush1.msra.mxu0 %v88
    %1035 = vmatprep.subr.mxu0 0.0
    %1036 = vmatpush1.msra.mxu0 %v89
    %1037 = vmatprep.subr.mxu0 0.0
    %1038 = vmatpush1.msra.mxu0 0.0
    %1039 = vmatprep.subr.mxu0 0.0
    %1040 = vmatpush1.msra.mxu0 0.0
    %1041 = vmatprep.subr.mxu0 0.0
    %1042 = vmatpush1.msra.mxu0 0.0
    %1043 = vmatprep.subr.mxu0 0.0
    %1044 = vmatpush1.msra.mxu0 0.0
    %1045 = vmatprep.subr.mxu0 0.0
    %1046 = vmatpush1.msra.mxu0 0.0
    %1047 = vmatprep.subr.mxu0 0.0
    %1048 = vmatpush1.msra.mxu0 0.0
    %1049 = vmatprep.subr.mxu0 0.0
    %1050 = vmatpush1.msra.mxu0 0.0
    %1051 = vmatprep.subr.mxu0 0.0
    %1052 = vmatpush1.msra.mxu0 0.0
    %1053 = vmatprep.subr.mxu0 0.0
    %1054 = vmatpush1.msra.mxu0 0.0
    %1055 = vmatprep.subr.mxu0 0.0
    %1056 = vmatpush1.msra.mxu0 0.0
    %1057 = vmatprep.subr.mxu0 0.0
    %1058 = vmatpush1.msra.mxu0 0.0
    %1059 = vmatprep.subr.mxu0 0.0
    %1060 = vmatpush1.msra.mxu0 0.0
    %1061 = vmatprep.subr.mxu0 0.0
    %1062 = vmatpush1.msra.mxu0 0.0
    %1063 = vmatprep.subr.mxu0 0.0
    %1064 = vmatpush1.msra.mxu0 0.0
    %1065 = vmatprep.subr.mxu0 0.0
    %1066 = vmatpush1.msra.mxu0 0.0
    %1067 = vmatprep.subr.mxu0 0.0
    %1068 = vmatpush1.msra.mxu0 0.0
    %1069 = vmatprep.mubr.f32.mxu0 0.0
    %1070 = vmatmul.mubr.f32.gmra.mrb[0].mxu0 %v897
    %v1071 = vpop.f32.mrb[0].mxu0
    %v1072 = vadd.f32 0.0, %v1071
    %v1073 = vpop.f32.mrb[0].mxu0
    %1074 = vdwg.mxu0
    %1075 = vmatprep.subr.mxu0 0.0
    %1076 = vmatpush1.msra.mxu0 %v90
    %1077 = vmatprep.subr.mxu0 0.0
    %1078 = vmatpush1.msra.mxu0 %v91
    %1079 = vmatprep.subr.mxu0 0.0
    %1080 = vmatpush1.msra.mxu0 %v92
    %1081 = vmatprep.subr.mxu0 0.0
    %1082 = vmatpush1.msra.mxu0 %v93
    %1083 = vmatprep.subr.mxu0 0.0
    %1084 = vmatpush1.msra.mxu0 %v94
    %1085 = vmatprep.subr.mxu0 0.0
    %1086 = vmatpush1.msra.mxu0 %v95
    %1087 = vmatprep.subr.mxu0 0.0
    %1088 = vmatpush1.msra.mxu0 %v96
    %1089 = vmatprep.subr.mxu0 0.0
    %1090 = vmatpush1.msra.mxu0 %v97
    %1091 = vmatprep.subr.mxu0 0.0
    %1092 = vmatpush1.msra.mxu0 %v98
    %1093 = vmatprep.subr.mxu0 0.0
    %1094 = vmatpush1.msra.mxu0 %v99
    %1095 = vmatprep.subr.mxu0 0.0
    %1096 = vmatpush1.msra.mxu0 %v100
    %1097 = vmatprep.subr.mxu0 0.0
    %1098 = vmatpush1.msra.mxu0 %v101
    %1099 = vmatprep.subr.mxu0 0.0
    %1100 = vmatpush1.msra.mxu0 %v102
    %1101 = vmatprep.subr.mxu0 0.0
    %1102 = vmatpush1.msra.mxu0 %v103
    %1103 = vmatprep.subr.mxu0 0.0
    %1104 = vmatpush1.msra.mxu0 %v104
    %1105 = vmatprep.subr.mxu0 0.0
    %1106 = vmatpush1.msra.mxu0 %v105
    %1107 = vmatprep.subr.mxu0 0.0
    %1108 = vmatpush1.msra.mxu0 0.0
    %1109 = vmatprep.subr.mxu0 0.0
    %1110 = vmatpush1.msra.mxu0 0.0
    %1111 = vmatprep.subr.mxu0 0.0
    %1112 = vmatpush1.msra.mxu0 0.0
    %1113 = vmatprep.subr.mxu0 0.0
    %1114 = vmatpush1.msra.mxu0 0.0
    %1115 = vmatprep.subr.mxu0 0.0
    %1116 = vmatpush1.msra.mxu0 0.0
    %1117 = vmatprep.subr.mxu0 0.0
    %1118 = vmatpush1.msra.mxu0 0.0
    %1119 = vmatprep.subr.mxu0 0.0
    %1120 = vmatpush1.msra.mxu0 0.0
    %1121 = vmatprep.subr.mxu0 0.0
    %1122 = vmatpush1.msra.mxu0 0.0
    %1123 = vmatprep.subr.mxu0 0.0
    %1124 = vmatpush1.msra.mxu0 0.0
    %1125 = vmatprep.subr.mxu0 0.0
    %1126 = vmatpush1.msra.mxu0 0.0
    %1127 = vmatprep.subr.mxu0 0.0
    %1128 = vmatpush1.msra.mxu0 0.0
    %1129 = vmatprep.subr.mxu0 0.0
    %1130 = vmatpush1.msra.mxu0 0.0
    %1131 = vmatprep.subr.mxu0 0.0
    %1132 = vmatpush1.msra.mxu0 0.0
    %1133 = vmatprep.subr.mxu0 0.0
    %1134 = vmatpush1.msra.mxu0 0.0
    %1135 = vmatprep.subr.mxu0 0.0
    %1136 = vmatpush1.msra.mxu0 0.0
    %1137 = vmatprep.subr.mxu0 0.0
    %1138 = vmatpush1.msra.mxu0 0.0
    %1139 = vmatprep.mubr.f32.mxu0 0.0
    %1140 = vmatmul.mubr.f32.gmra.mrb[0].mxu0 %v898
    %v1141 = vpop.f32.mrb[0].mxu0
    %v1142 = vadd.f32 0.0, %v1141
    %v1143 = vpop.f32.mrb[0].mxu0
    %1144 = vdwg.mxu0
    %1145 = vmatprep.subr.mxu0 0.0
    %1146 = vmatpush1.msra.mxu0 %v106
    %1147 = vmatprep.subr.mxu0 0.0
    %1148 = vmatpush1.msra.mxu0 %v107
    %1149 = vmatprep.subr.mxu0 0.0
    %1150 = vmatpush1.msra.mxu0 %v108
    %1151 = vmatprep.subr.mxu0 0.0
    %1152 = vmatpush1.msra.mxu0 %v109
    %1153 = vmatprep.subr.mxu0 0.0
    %1154 = vmatpush1.msra.mxu0 %v110
    %1155 = vmatprep.subr.mxu0 0.0
    %1156 = vmatpush1.msra.mxu0 %v111
    %1157 = vmatprep.subr.mxu0 0.0
    %1158 = vmatpush1.msra.mxu0 %v112
    %1159 = vmatprep.subr.mxu0 0.0
    %1160 = vmatpush1.msra.mxu0 %v113
    %1161 = vmatprep.subr.mxu0 0.0
    %1162 = vmatpush1.msra.mxu0 %v114
    %1163 = vmatprep.subr.mxu0 0.0
    %1164 = vmatpush1.msra.mxu0 %v115
    %1165 = vmatprep.subr.mxu0 0.0
    %1166 = vmatpush1.msra.mxu0 %v116
    %1167 = vmatprep.subr.mxu0 0.0
    %1168 = vmatpush1.msra.mxu0 %v117
    %1169 = vmatprep.subr.mxu0 0.0
    %1170 = vmatpush1.msra.mxu0 %v118
    %1171 = vmatprep.subr.mxu0 0.0
    %1172 = vmatpush1.msra.mxu0 %v119
    %1173 = vmatprep.subr.mxu0 0.0
    %1174 = vmatpush1.msra.mxu0 %v120
    %1175 = vmatprep.subr.mxu0 0.0
    %1176 = vmatpush1.msra.mxu0 %v121
    %1177 = vmatprep.subr.mxu0 0.0
    %1178 = vmatpush1.msra.mxu0 0.0
    %1179 = vmatprep.subr.mxu0 0.0
    %1180 = vmatpush1.msra.mxu0 0.0
    %1181 = vmatprep.subr.mxu0 0.0
    %1182 = vmatpush1.msra.mxu0 0.0
    %1183 = vmatprep.subr.mxu0 0.0
    %1184 = vmatpush1.msra.mxu0 0.0
    %1185 = vmatprep.subr.mxu0 0.0
    %1186 = vmatpush1.msra.mxu0 0.0
    %1187 = vmatprep.subr.mxu0 0.0
    %1188 = vmatpush1.msra.mxu0 0.0
    %1189 = vmatprep.subr.mxu0 0.0
    %1190 = vmatpush1.msra.mxu0 0.0
    %1191 = vmatprep.subr.mxu0 0.0
    %1192 = vmatpush1.msra.mxu0 0.0
    %1193 = vmatprep.subr.mxu0 0.0
    %1194 = vmatpush1.msra.mxu0 0.0
    %1195 = vmatprep.subr.mxu0 0.0
    %1196 = vmatpush1.msra.mxu0 0.0
    %1197 = vmatprep.subr.mxu0 0.0
    %1198 = vmatpush1.msra.mxu0 0.0
    %1199 = vmatprep.subr.mxu0 0.0
    %1200 = vmatpush1.msra.mxu0 0.0
    %1201 = vmatprep.subr.mxu0 0.0
    %1202 = vmatpush1.msra.mxu0 0.0
    %1203 = vmatprep.subr.mxu0 0.0
    %1204 = vmatpush1.msra.mxu0 0.0
    %1205 = vmatprep.subr.mxu0 0.0
    %1206 = vmatpush1.msra.mxu0 0.0
    %1207 = vmatprep.subr.mxu0 0.0
    %1208 = vmatpush1.msra.mxu0 0.0
    %1209 = vmatprep.mubr.f32.mxu0 0.0
    %1210 = vmatmul.mubr.f32.gmra.mrb[0].mxu0 %v899
    %v1211 = vpop.f32.mrb[0].mxu0
    %v1212 = vadd.f32 0.0, %v1211
    %v1213 = vpop.f32.mrb[0].mxu0
    %1214 = vdwg.mxu0
    %1215 = vmatprep.subr.mxu0 0.0
    %1216 = vmatpush1.msra.mxu0 %v122
    %1217 = vmatprep.subr.mxu0 0.0
    %1218 = vmatpush1.msra.mxu0 %v123
    %1219 = vmatprep.subr.mxu0 0.0
    %1220 = vmatpush1.msra.mxu0 %v124
    %1221 = vmatprep.subr.mxu0 0.0
    %1222 = vmatpush1.msra.mxu0 %v125
    %1223 = vmatprep.subr.mxu0 0.0
    %1224 = vmatpush1.msra.mxu0 %v126
    %1225 = vmatprep.subr.mxu0 0.0
    %1226 = vmatpush1.msra.mxu0 %v127
    %1227 = vmatprep.subr.mxu0 0.0
    %1228 = vmatpush1.msra.mxu0 %v128
    %1229 = vmatprep.subr.mxu0 0.0
    %1230 = vmatpush1.msra.mxu0 %v129
    %1231 = vmatprep.subr.mxu0 0.0
    %1232 = vmatpush1.msra.mxu0 %v130
    %1233 = vmatprep.subr.mxu0 0.0
    %1234 = vmatpush1.msra.mxu0 %v131
    %1235 = vmatprep.subr.mxu0 0.0
    %1236 = vmatpush1.msra.mxu0 %v132
    %1237 = vmatprep.subr.mxu0 0.0
    %1238 = vmatpush1.msra.mxu0 %v133
    %1239 = vmatprep.subr.mxu0 0.0
    %1240 = vmatpush1.msra.mxu0 %v134
    %1241 = vmatprep.subr.mxu0 0.0
    %1242 = vmatpush1.msra.mxu0 %v135
    %1243 = vmatprep.subr.mxu0 0.0
    %1244 = vmatpush1.msra.mxu0 %v136
    %1245 = vmatprep.subr.mxu0 0.0
    %1246 = vmatpush1.msra.mxu0 %v137
    %1247 = vmatprep.subr.mxu0 0.0
    %1248 = vmatpush1.msra.mxu0 0.0
    %1249 = vmatprep.subr.mxu0 0.0
    %1250 = vmatpush1.msra.mxu0 0.0
    %1251 = vmatprep.subr.mxu0 0.0
    %1252 = vmatpush1.msra.mxu0 0.0
    %1253 = vmatprep.subr.mxu0 0.0
    %1254 = vmatpush1.msra.mxu0 0.0
    %1255 = vmatprep.subr.mxu0 0.0
    %1256 = vmatpush1.msra.mxu0 0.0
    %1257 = vmatprep.subr.mxu0 0.0
    %1258 = vmatpush1.msra.mxu0 0.0
    %1259 = vmatprep.subr.mxu0 0.0
    %1260 = vmatpush1.msra.mxu0 0.0
    %1261 = vmatprep.subr.mxu0 0.0
    %1262 = vmatpush1.msra.mxu0 0.0
    %1263 = vmatprep.subr.mxu0 0.0
    %1264 = vmatpush1.msra.mxu0 0.0
    %1265 = vmatprep.subr.mxu0 0.0
    %1266 = vmatpush1.msra.mxu0 0.0
    %1267 = vmatprep.subr.mxu0 0.0
    %1268 = vmatpush1.msra.mxu0 0.0
    %1269 = vmatprep.subr.mxu0 0.0
    %1270 = vmatpush1.msra.mxu0 0.0
    %1271 = vmatprep.subr.mxu0 0.0
    %1272 = vmatpush1.msra.mxu0 0.0
    %1273 = vmatprep.subr.mxu0 0.0
    %1274 = vmatpush1.msra.mxu0 0.0
    %1275 = vmatprep.subr.mxu0 0.0
    %1276 = vmatpush1.msra.mxu0 0.0
    %1277 = vmatprep.subr.mxu0 0.0
    %1278 = vmatpush1.msra.mxu0 0.0
    %1279 = vmatprep.mubr.f32.mxu0 0.0
    %1280 = vmatmul.mubr.f32.gmra.mrb[0].mxu0 %v900
    %v1281 = vpop.f32.mrb[0].mxu0
    %v1282 = vadd.f32 0.0, %v1281
    %v1283 = vpop.f32.mrb[0].mxu0
    %1284 = vdwg.mxu0
    %1285 = vmatprep.subr.mxu0 0.0
    %1286 = vmatpush1.msra.mxu0 %v138
    %1287 = vmatprep.subr.mxu0 0.0
    %1288 = vmatpush1.msra.mxu0 %v139
    %1289 = vmatprep.subr.mxu0 0.0
    %1290 = vmatpush1.msra.mxu0 %v140
    %1291 = vmatprep.subr.mxu0 0.0
    %1292 = vmatpush1.msra.mxu0 %v141
    %1293 = vmatprep.subr.mxu0 0.0
    %1294 = vmatpush1.msra.mxu0 %v142
    %1295 = vmatprep.subr.mxu0 0.0
    %1296 = vmatpush1.msra.mxu0 %v143
    %1297 = vmatprep.subr.mxu0 0.0
    %1298 = vmatpush1.msra.mxu0 %v144
    %1299 = vmatprep.subr.mxu0 0.0
    %1300 = vmatpush1.msra.mxu0 %v145
    %1301 = vmatprep.subr.mxu0 0.0
    %1302 = vmatpush1.msra.mxu0 %v146
    %1303 = vmatprep.subr.mxu0 0.0
    %1304 = vmatpush1.msra.mxu0 %v147
    %1305 = vmatprep.subr.mxu0 0.0
    %1306 = vmatpush1.msra.mxu0 %v148
    %1307 = vmatprep.subr.mxu0 0.0
    %1308 = vmatpush1.msra.mxu0 %v149
    %1309 = vmatprep.subr.mxu0 0.0
    %1310 = vmatpush1.msra.mxu0 %v150
    %1311 = vmatprep.subr.mxu0 0.0
    %1312 = vmatpush1.msra.mxu0 %v151
    %1313 = vmatprep.subr.mxu0 0.0
    %1314 = vmatpush1.msra.mxu0 %v152
    %1315 = vmatprep.subr.mxu0 0.0
    %1316 = vmatpush1.msra.mxu0 %v153
    %1317 = vmatprep.subr.mxu0 0.0
    %1318 = vmatpush1.msra.mxu0 0.0
    %1319 = vmatprep.subr.mxu0 0.0
    %1320 = vmatpush1.msra.mxu0 0.0
    %1321 = vmatprep.subr.mxu0 0.0
    %1322 = vmatpush1.msra.mxu0 0.0
    %1323 = vmatprep.subr.mxu0 0.0
    %1324 = vmatpush1.msra.mxu0 0.0
    %1325 = vmatprep.subr.mxu0 0.0
    %1326 = vmatpush1.msra.mxu0 0.0
    %1327 = vmatprep.subr.mxu0 0.0
    %1328 = vmatpush1.msra.mxu0 0.0
    %1329 = vmatprep.subr.mxu0 0.0
    %1330 = vmatpush1.msra.mxu0 0.0
    %1331 = vmatprep.subr.mxu0 0.0
    %1332 = vmatpush1.msra.mxu0 0.0
    %1333 = vmatprep.subr.mxu0 0.0
    %1334 = vmatpush1.msra.mxu0 0.0
    %1335 = vmatprep.subr.mxu0 0.0
    %1336 = vmatpush1.msra.mxu0 0.0
    %1337 = vmatprep.subr.mxu0 0.0
    %1338 = vmatpush1.msra.mxu0 0.0
    %1339 = vmatprep.subr.mxu0 0.0
    %1340 = vmatpush1.msra.mxu0 0.0
    %1341 = vmatprep.subr.mxu0 0.0
    %1342 = vmatpush1.msra.mxu0 0.0
    %1343 = vmatprep.subr.mxu0 0.0
    %1344 = vmatpush1.msra.mxu0 0.0
    %1345 = vmatprep.subr.mxu0 0.0
    %1346 = vmatpush1.msra.mxu0 0.0
    %1347 = vmatprep.subr.mxu0 0.0
    %1348 = vmatpush1.msra.mxu0 0.0
    %1349 = vmatprep.mubr.f32.mxu0 0.0
    %1350 = vmatmul.mubr.f32.gmra.mrb[0].mxu0 %v901
    %v1351 = vpop.f32.mrb[0].mxu0
    %v1352 = vadd.f32 0.0, %v1351
    %v1353 = vpop.f32.mrb[0].mxu0
    %1354 = vdwg.mxu0
    %1355 = vmatprep.subr.mxu0 0.0
    %1356 = vmatpush1.msra.mxu0 %v154
    %1357 = vmatprep.subr.mxu0 0.0
    %1358 = vmatpush1.msra.mxu0 %v155
    %1359 = vmatprep.subr.mxu0 0.0
    %1360 = vmatpush1.msra.mxu0 %v156
    %1361 = vmatprep.subr.mxu0 0.0
    %1362 = vmatpush1.msra.mxu0 %v157
    %1363 = vmatprep.subr.mxu0 0.0
    %1364 = vmatpush1.msra.mxu0 %v158
    %1365 = vmatprep.subr.mxu0 0.0
    %1366 = vmatpush1.msra.mxu0 %v159
    %1367 = vmatprep.subr.mxu0 0.0
    %1368 = vmatpush1.msra.mxu0 %v160
    %1369 = vmatprep.subr.mxu0 0.0
    %1370 = vmatpush1.msra.mxu0 %v161
    %1371 = vmatprep.subr.mxu0 0.0
    %1372 = vmatpush1.msra.mxu0 %v162
    %1373 = vmatprep.subr.mxu0 0.0
    %1374 = vmatpush1.msra.mxu0 %v163
    %1375 = vmatprep.subr.mxu0 0.0
    %1376 = vmatpush1.msra.mxu0 %v164
    %1377 = vmatprep.subr.mxu0 0.0
    %1378 = vmatpush1.msra.mxu0 %v165
    %1379 = vmatprep.subr.mxu0 0.0
    %1380 = vmatpush1.msra.mxu0 %v166
    %1381 = vmatprep.subr.mxu0 0.0
    %1382 = vmatpush1.msra.mxu0 %v167
    %1383 = vmatprep.subr.mxu0 0.0
    %1384 = vmatpush1.msra.mxu0 %v168
    %1385 = vmatprep.subr.mxu0 0.0
    %1386 = vmatpush1.msra.mxu0 %v169
    %1387 = vmatprep.subr.mxu0 0.0
    %1388 = vmatpush1.msra.mxu0 0.0
    %1389 = vmatprep.subr.mxu0 0.0
    %1390 = vmatpush1.msra.mxu0 0.0
    %1391 = vmatprep.subr.mxu0 0.0
    %1392 = vmatpush1.msra.mxu0 0.0
    %1393 = vmatprep.subr.mxu0 0.0
    %1394 = vmatpush1.msra.mxu0 0.0
    %1395 = vmatprep.subr.mxu0 0.0
    %1396 = vmatpush1.msra.mxu0 0.0
    %1397 = vmatprep.subr.mxu0 0.0
    %1398 = vmatpush1.msra.mxu0 0.0
    %1399 = vmatprep.subr.mxu0 0.0
    %1400 = vmatpush1.msra.mxu0 0.0
    %1401 = vmatprep.subr.mxu0 0.0
    %1402 = vmatpush1.msra.mxu0 0.0
    %1403 = vmatprep.subr.mxu0 0.0
    %1404 = vmatpush1.msra.mxu0 0.0
    %1405 = vmatprep.subr.mxu0 0.0
    %1406 = vmatpush1.msra.mxu0 0.0
    %1407 = vmatprep.subr.mxu0 0.0
    %1408 = vmatpush1.msra.mxu0 0.0
    %1409 = vmatprep.subr.mxu0 0.0
    %1410 = vmatpush1.msra.mxu0 0.0
    %1411 = vmatprep.subr.mxu0 0.0
    %1412 = vmatpush1.msra.mxu0 0.0
    %1413 = vmatprep.subr.mxu0 0.0
    %1414 = vmatpush1.msra.mxu0 0.0
    %1415 = vmatprep.subr.mxu0 0.0
    %1416 = vmatpush1.msra.mxu0 0.0
    %1417 = vmatprep.subr.mxu0 0.0
    %1418 = vmatpush1.msra.mxu0 0.0
    %1419 = vmatprep.mubr.f32.mxu0 0.0
    %1420 = vmatmul.mubr.f32.gmra.mrb[0].mxu0 %v902
    %v1421 = vpop.f32.mrb[0].mxu0
    %v1422 = vadd.f32 0.0, %v1421
    %v1423 = vpop.f32.mrb[0].mxu0
    %1424 = vdwg.mxu0
    %1425 = vmatprep.subr.mxu0 0.0
    %1426 = vmatpush1.msra.mxu0 %v170
    %1427 = vmatprep.subr.mxu0 0.0
    %1428 = vmatpush1.msra.mxu0 %v171
    %1429 = vmatprep.subr.mxu0 0.0
    %1430 = vmatpush1.msra.mxu0 %v172
    %1431 = vmatprep.subr.mxu0 0.0
    %1432 = vmatpush1.msra.mxu0 %v173
    %1433 = vmatprep.subr.mxu0 0.0
    %1434 = vmatpush1.msra.mxu0 %v174
    %1435 = vmatprep.subr.mxu0 0.0
    %1436 = vmatpush1.msra.mxu0 %v175
    %1437 = vmatprep.subr.mxu0 0.0
    %1438 = vmatpush1.msra.mxu0 %v176
    %1439 = vmatprep.subr.mxu0 0.0
    %1440 = vmatpush1.msra.mxu0 %v177
    %1441 = vmatprep.subr.mxu0 0.0
    %1442 = vmatpush1.msra.mxu0 %v178
    %1443 = vmatprep.subr.mxu0 0.0
    %1444 = vmatpush1.msra.mxu0 %v179
    %1445 = vmatprep.subr.mxu0 0.0
    %1446 = vmatpush1.msra.mxu0 %v180
    %1447 = vmatprep.subr.mxu0 0.0
    %1448 = vmatpush1.msra.mxu0 %v181
    %1449 = vmatprep.subr.mxu0 0.0
    %1450 = vmatpush1.msra.mxu0 %v182
    %1451 = vmatprep.subr.mxu0 0.0
    %1452 = vmatpush1.msra.mxu0 %v183
    %1453 = vmatprep.subr.mxu0 0.0
    %1454 = vmatpush1.msra.mxu0 %v184
    %1455 = vmatprep.subr.mxu0 0.0
    %1456 = vmatpush1.msra.mxu0 %v185
    %1457 = vmatprep.subr.mxu0 0.0
    %1458 = vmatpush1.msra.mxu0 0.0
    %1459 = vmatprep.subr.mxu0 0.0
    %1460 = vmatpush1.msra.mxu0 0.0
    %1461 = vmatprep.subr.mxu0 0.0
    %1462 = vmatpush1.msra.mxu0 0.0
    %1463 = vmatprep.subr.mxu0 0.0
    %1464 = vmatpush1.msra.mxu0 0.0
    %1465 = vmatprep.subr.mxu0 0.0
    %1466 = vmatpush1.msra.mxu0 0.0
    %1467 = vmatprep.subr.mxu0 0.0
    %1468 = vmatpush1.msra.mxu0 0.0
    %1469 = vmatprep.subr.mxu0 0.0
    %1470 = vmatpush1.msra.mxu0 0.0
    %1471 = vmatprep.subr.mxu0 0.0
    %1472 = vmatpush1.msra.mxu0 0.0
    %1473 = vmatprep.subr.mxu0 0.0
    %1474 = vmatpush1.msra.mxu0 0.0
    %1475 = vmatprep.subr.mxu0 0.0
    %1476 = vmatpush1.msra.mxu0 0.0
    %1477 = vmatprep.subr.mxu0 0.0
    %1478 = vmatpush1.msra.mxu0 0.0
    %1479 = vmatprep.subr.mxu0 0.0
    %1480 = vmatpush1.msra.mxu0 0.0
    %1481 = vmatprep.subr.mxu0 0.0
    %1482 = vmatpush1.msra.mxu0 0.0
    %1483 = vmatprep.subr.mxu0 0.0
    %1484 = vmatpush1.msra.mxu0 0.0
    %1485 = vmatprep.subr.mxu0 0.0
    %1486 = vmatpush1.msra.mxu0 0.0
    %1487 = vmatprep.subr.mxu0 0.0
    %1488 = vmatpush1.msra.mxu0 0.0
    %1489 = vmatprep.mubr.f32.mxu0 0.0
    %1490 = vmatmul.mubr.f32.gmra.mrb[0].mxu0 %v903
    %v1491 = vpop.f32.mrb[0].mxu0
    %v1492 = vadd.f32 0.0, %v1491
    %v1493 = vpop.f32.mrb[0].mxu0
    %1494 = vdwg.mxu0
    %v1503 = vrot.slane %v1072, 7
    %v1504 = vsel %vm913, %v1503, %v1002
    %v1505 = vrot.slane %v1142, 6
    %v1506 = vsel %vm916, %v1505, %v1504
    %v1507 = vrot.slane %v1212, 5
    %v1508 = vsel %vm919, %v1507, %v1506
    %v1509 = vrot.slane %v1282, 4
    %v1510 = vsel %vm922, %v1509, %v1508
    %v1511 = vrot.slane %v1352, 3
    %v1512 = vsel %vm925, %v1511, %v1510
    %v1513 = vrot.slane %v1422, 2
    %v1514 = vsel %vm928, %v1513, %v1512
    %v1515 = vrot.slane %v1492, 1
    %v1516 = vsel %vm931, %v1515, %v1514
    %v1518 = vld [vmem:[#allocation7] sm:$0xff]
    %v1519 = vld [vmem:[#allocation7 + $0x8] sm:$0xff]
    %v1520 = vld [vmem:[#allocation7 + $0x10] sm:$0xff]
    %v1521 = vld [vmem:[#allocation7 + $0x18] sm:$0xff]
    %v1522 = vld [vmem:[#allocation7 + $0x20] sm:$0xff]
    %v1523 = vld [vmem:[#allocation7 + $0x28] sm:$0xff]
    %v1524 = vld [vmem:[#allocation7 + $0x30] sm:$0xff]
    %v1525 = vld [vmem:[#allocation7 + $0x38] sm:$0xff]
    %v1526 = vld [vmem:[#allocation7 + $0x40] sm:$0xff]
    %v1527 = vld [vmem:[#allocation7 + $0x48] sm:$0xff]
    %v1528 = vld [vmem:[#allocation7 + $0x50] sm:$0xff]
    %v1529 = vld [vmem:[#allocation7 + $0x58] sm:$0xff]
    %v1530 = vld [vmem:[#allocation7 + $0x60] sm:$0xff]
    %v1531 = vld [vmem:[#allocation7 + $0x68] sm:$0xff]
    %v1532 = vld [vmem:[#allocation7 + $0x70] sm:$0xff]
    %v1533 = vld [vmem:[#allocation7 + $0x78] sm:$0xff]
    %v1534 = vld [vmem:[#allocation7 + $0x80] sm:$0xff]
    %v1535 = vld [vmem:[#allocation7 + $0x88] sm:$0xff]
    %v1536 = vld [vmem:[#allocation7 + $0x90] sm:$0xff]
    %v1537 = vld [vmem:[#allocation7 + $0x98] sm:$0xff]
    %v1538 = vld [vmem:[#allocation7 + $0xa0] sm:$0xff]
    %v1539 = vld [vmem:[#allocation7 + $0xa8] sm:$0xff]
    %v1540 = vld [vmem:[#allocation7 + $0xb0] sm:$0xff]
    %v1541 = vld [vmem:[#allocation7 + $0xb8] sm:$0xff]
    %v1542 = vld [vmem:[#allocation7 + $0xc0] sm:$0xff]
    %v1543 = vld [vmem:[#allocation7 + $0xc8] sm:$0xff]
    %v1544 = vld [vmem:[#allocation7 + $0xd0] sm:$0xff]
    %v1545 = vld [vmem:[#allocation7 + $0xd8] sm:$0xff]
    %v1546 = vld [vmem:[#allocation7 + $0xe0] sm:$0xff]
    %v1547 = vld [vmem:[#allocation7 + $0xe8] sm:$0xff]
    %v1548 = vld [vmem:[#allocation7 + $0xf0] sm:$0xff]
    %v1549 = vld [vmem:[#allocation7 + $0xf8] sm:$0xff]
    %1550 = vmatprep.subr.mxu0 %v1519
    %1551 = vmatpush1.xpose.msra.mxu0 %v1518
    %1552 = vmatprep.subr.mxu0 %v1521
    %1553 = vmatpush1.xpose.msra.mxu0 %v1520
    %1554 = vmatprep.subr.mxu0 %v1523
    %1555 = vmatpush1.xpose.msra.mxu0 %v1522
    %1556 = vmatprep.subr.mxu0 %v1525
    %1557 = vmatpush1.xpose.msra.mxu0 %v1524
    %1558 = vmatprep.subr.mxu0 %v1527
    %1559 = vmatpush1.xpose.msra.mxu0 %v1526
    %1560 = vmatprep.subr.mxu0 %v1529
    %1561 = vmatpush1.xpose.msra.mxu0 %v1528
    %1562 = vmatprep.subr.mxu0 %v1531
    %1563 = vmatpush1.xpose.msra.mxu0 %v1530
    %1564 = vmatprep.subr.mxu0 %v1533
    %1565 = vmatpush1.xpose.msra.mxu0 %v1532
    %1566 = vmatprep.subr.mxu0 %v1535
    %1567 = vmatpush1.xpose.msra.mxu0 %v1534
    %1568 = vmatprep.subr.mxu0 %v1537
    %1569 = vmatpush1.xpose.msra.mxu0 %v1536
    %1570 = vmatprep.subr.mxu0 %v1539
    %1571 = vmatpush1.xpose.msra.mxu0 %v1538
    %1572 = vmatprep.subr.mxu0 %v1541
    %1573 = vmatpush1.xpose.msra.mxu0 %v1540
    %1574 = vmatprep.subr.mxu0 %v1543
    %1575 = vmatpush1.xpose.msra.mxu0 %v1542
    %1576 = vmatprep.subr.mxu0 %v1545
    %1577 = vmatpush1.xpose.msra.mxu0 %v1544
    %1578 = vmatprep.subr.mxu0 %v1547
    %1579 = vmatpush1.xpose.msra.mxu0 %v1546
    %1580 = vmatprep.subr.mxu0 %v1549
    %1581 = vmatpush1.xpose.msra.mxu0 %v1548
    %1582 = vmatprep.subr.mxu0 0.0
    %1583 = vmatpush1.xpose.msra.mxu0 0.0
    %1584 = vmatprep.subr.mxu0 0.0
    %1585 = vmatpush1.xpose.msra.mxu0 0.0
    %1586 = vmatprep.subr.mxu0 0.0
    %1587 = vmatpush1.xpose.msra.mxu0 0.0
    %1588 = vmatprep.subr.mxu0 0.0
    %1589 = vmatpush1.xpose.msra.mxu0 0.0
    %1590 = vmatprep.subr.mxu0 0.0
    %1591 = vmatpush1.xpose.msra.mxu0 0.0
    %1592 = vmatprep.subr.mxu0 0.0
    %1593 = vmatpush1.xpose.msra.mxu0 0.0
    %1594 = vmatprep.subr.mxu0 0.0
    %1595 = vmatpush1.xpose.msra.mxu0 0.0
    %1596 = vmatprep.subr.mxu0 0.0
    %1597 = vmatpush1.xpose.msra.mxu0 0.0
    %1598 = vmatprep.subr.mxu0 0.0
    %1599 = vmatpush1.xpose.msra.mxu0 0.0
    %1600 = vmatprep.subr.mxu0 0.0
    %1601 = vmatpush1.xpose.msra.mxu0 0.0
    %1602 = vmatprep.subr.mxu0 0.0
    %1603 = vmatpush1.xpose.msra.mxu0 0.0
    %1604 = vmatprep.subr.mxu0 0.0
    %1605 = vmatpush1.xpose.msra.mxu0 0.0
    %1606 = vmatprep.subr.mxu0 0.0
    %1607 = vmatpush1.xpose.msra.mxu0 0.0
    %1608 = vmatprep.subr.mxu0 0.0
    %1609 = vmatpush1.xpose.msra.mxu0 0.0
    %1610 = vmatprep.subr.mxu0 0.0
    %1611 = vmatpush1.xpose.msra.mxu0 0.0
    %1612 = vmatprep.subr.mxu0 0.0
    %1613 = vmatpush1.xpose.msra.mxu0 0.0
    %1614 = vmatprep.mubr.f32.mxu0 %v1516
    %1615 = vmatmul.mubr.f32.gmra.mrb[0].mxu0 %v57
    %v1616 = vpop.f32.mrb[0].mxu0
    %v1617 = vadd.f32 0.0, %v1616
    %v1618 = vpop.f32.mrb[0].mxu0
    %1619 = vdwg.mxu0
    %v1620 = vtanh.pop %v1617
    %1621 = vst [vmem:[#allocation9] sm:$0xff] %v1620
    // Predicated region
    $region26: #{tpu_custom_call.1} parent=1 // pred_check
      _
    $region27: #{tpu_custom_call.1} parent=1 // pred_check_branch
      %1623 = sbr.rel (0) target = $region29
    $region28: #{tpu_custom_call.1} parent=1 // pred_region
      %s1625 = ssub.s32 128, 128
      %1626 = vsyncadd [#allocation4], %s1625
      %s1628 = sshll.u32 [#allocation8], 4
      %s1629 = int_to_ptr.vmem [resolvable:$true] %s1628
      %1631 = dma.vmem_to_hbm [thread:$0]  %s1629, 128, %s3, [#allocation4]
    $region29: #{tpu_custom_call.1} parent=1 // pred_fallthru
      _
    // Predicated region
    $region30: #{tpu_custom_call.1} parent=1 // pred_check
      _
    $region31: #{tpu_custom_call.1} parent=1 // pred_check_branch
      %1633 = sbr.rel (0) target = $region33
    $region32: #{tpu_custom_call.1} parent=1 // pred_region
      %s1635 = ssub.s32 128, 128
      %1636 = vsyncadd [#allocation10], %s1635
      %s1638 = sshll.u32 [#allocation9], 4
      %s1639 = int_to_ptr.vmem [resolvable:$true] %s1638
      %1641 = dma.vmem_to_hbm [thread:$0]  %s1639, 128, %s4, [#allocation10]
    $region33: #{tpu_custom_call.1} parent=1 // pred_fallthru
      _
    // Predicated region
    $region34: #{tpu_custom_call.1} parent=1 // pred_check
      _
    $region35: #{tpu_custom_call.1} parent=1 // pred_check_branch
      %1643 = sbr.rel (0) target = $region37
    $region36: #{tpu_custom_call.1} parent=1 // pred_region
      %1644 = dma.done [#allocation4], 128
    $region37: #{tpu_custom_call.1} parent=1 // pred_fallthru
      _
    // Predicated region
    $region38: #{tpu_custom_call.1} parent=1 // pred_check
      _
    $region39: #{tpu_custom_call.1} parent=1 // pred_check_branch
      %1646 = sbr.rel (0) target = $region41
    $region40: #{tpu_custom_call.1} parent=1 // pred_region
      %1647 = dma.done [#allocation10], 128
    $region41: #{tpu_custom_call.1} parent=1 // pred_fallthru
      _
    %1648 = vsyncpa [#allocation3], 1
    %1649 = vsyncpa [#allocation6], 1
    %1650 = vsyncpa [#allocation4], 1
    %1651 = vsyncpa [#allocation10], 1

</llo_original>
